<compile_context>
chip_gen: v5e
topology: v5e:2x2
jax: 0.10.0
libtpu: 0.0.40
codegen_flags: <defaults>
</compile_context>

<pallas_src>
import functools

import jax
import jax.numpy as jnp
from jax.experimental import pallas as pl
from jax.experimental.pallas import tpu as pltpu


def _round_up(n, m):
    return ((n + m - 1) // m) * m


def _sigmoid_tanh(x):
    # Exact sigmoid via tanh identity: single EUP push, result in [0, 1].
    return 0.5 * (1.0 + jnp.tanh(0.5 * x))


def lstm_head_kernel(ids_ref, emb_ref, wih_ref, b_ref, whh_ref,
                     fc1w_ref, fc1b_ref, fc2w_ref, fc2b_ref,
                     o_ref, gp_ref, *, seq_len, batch_pad, hidden):
    # ids_ref : (T*BP, 1) int32   time-major, batch padded to BP=8 sublanes
    # emb_ref : (Vpad, Epad)      zero-padded embedding table
    # wih_ref : (Epad, 4H)        input->hidden weights, gates packed [i|f|g|o]
    # b_ref   : (1, 4H)           combined bias (b_ih + b_hh)
    # whh_ref : (4H, 4H)          hidden->hidden weights, rows >= H are zero
    # fc1w_ref: (4H, 4H)          fc1 weight in [:H,:H], zero elsewhere
    # fc1b_ref: (1, 4H)           fc1 bias (zero-padded)
    # fc2w_ref: (4H, 1)           fc2 weight in [:H], zero elsewhere
    # fc2b_ref: (1, 1)
    # o_ref   : (BP, 1)
    # gp_ref  : (T, BP, 4H) VMEM scratch, staged input projection
    T, BP, H = seq_len, batch_pad, hidden
    G = 4 * H                       # 128: packed gate width (one vreg of lanes)
    NP = T * BP
    V_pad = emb_ref.shape[0]

    # ---- embedding gather as a one-hot MXU matmul --------------------------
    ids = ids_ref[...]                                           # (NP, 1) i32
    vpos = jax.lax.broadcasted_iota(jnp.int32, (NP, V_pad), 1)
    onehot = jnp.where(vpos == ids, 1.0, 0.0)                    # (NP, Vpad) f32
    x = jnp.dot(onehot, emb_ref[...],
                preferred_element_type=jnp.float32)              # (NP, Epad)

    # ---- hoisted input projection: one matmul covers all T timesteps -------
    gp = (jnp.dot(x, wih_ref[...], preferred_element_type=jnp.float32)
          + b_ref[...])                                          # (NP, 4H)
    gp_ref[...] = gp.reshape(T, BP, G)                           # tile-aligned

    # ---- lane masks (built once; tiny live set across the unroll) ----------
    lane = jax.lax.broadcasted_iota(jnp.int32, (BP, G), 1)
    g_mask = (lane >= 2 * H) & (lane < 3 * H)                    # g-gate lanes
    state_mask = lane < H                                        # state lanes

    h = jnp.zeros((BP, G), jnp.float32)                          # lanes >= H stay 0
    c = jnp.zeros((BP, G), jnp.float32)

    # ---- unrolled recurrence: only h, c, masks live across steps -----------
    for t in range(T):
        gates = gp_ref[t] + jnp.dot(h, whh_ref[...],
                                    preferred_element_type=jnp.float32)  # (BP,4H)
        # whole-vreg activations: sigmoid (tanh identity) for i/f/o, tanh for g
        act = jnp.where(g_mask, jnp.tanh(gates), _sigmoid_tanh(gates))
        # align f / g / o lane blocks onto the state lanes [0, H)  (XLU rolls)
        f_al = pltpu.roll(act, shift=3 * H, axis=1)
        g_al = pltpu.roll(act, shift=2 * H, axis=1)
        o_al = pltpu.roll(act, shift=1 * H, axis=1)
        # c = sigma(f)*c + sigma(i)*tanh(g); pad lanes forced to exactly 0
        c = jnp.where(state_mask, f_al * c + act * g_al, 0.0)
        h = o_al * jnp.tanh(c)          # pad lanes: tanh(0)=0 -> stay exactly 0

    # ---- head: fc1 -> dropout(eval=identity) -> tanh -> fc2 -> sigmoid -----
    z1 = jnp.tanh(jnp.dot(h, fc1w_ref[...],
                          preferred_element_type=jnp.float32) + fc1b_ref[...])
    z2 = (jnp.dot(z1, fc2w_ref[...], preferred_element_type=jnp.float32)
          + fc2b_ref[...])                                       # (BP, 1)
    o_ref[...] = _sigmoid_tanh(z2)                               # exact, in [0,1]


def net_forward(x_tokens, params):
    """x_tokens: int32 (B, T) token indices.  Returns (1, B, 1) like PyTorch."""
    B, T = x_tokens.shape
    B_pad = max(8, _round_up(B, 8))
    emb_p = params["emb_p"]
    V_pad, E_pad = emb_p.shape
    H = params["hidden"]
    G = 4 * H

    # Tiny wrapper-side reshuffle of the (B,T) int ids: time-major, batch
    # padded to 8 sublanes (pad token id 0 -> its rows are computed, ignored).
    ids = jnp.transpose(x_tokens.astype(jnp.int32))              # (T, B)
    ids = jnp.pad(ids, ((0, 0), (0, B_pad - B)))                 # (T, BP)
    ids = ids.reshape(T * B_pad, 1)

    kernel = functools.partial(lstm_head_kernel, seq_len=T,
                               batch_pad=B_pad, hidden=H)
    full = lambda shape: pl.BlockSpec(shape, lambda: (0,) * len(shape))

    out = pl.pallas_call(
        kernel,
        out_shape=jax.ShapeDtypeStruct((B_pad, 1), jnp.float32),
        in_specs=[
            full((T * B_pad, 1)),      # token ids (VMEM, one-hot source)
            full((V_pad, E_pad)),      # embedding table (padded)
            full((E_pad, G)),          # W_ih (packed gates)
            full((1, G)),              # combined bias
            full((G, G)),              # W_hh (rows >= H zero)
            full((G, G)),              # fc1 weight (padded)
            full((1, G)),              # fc1 bias (padded)
            full((G, 1)),              # fc2 weight (padded)
            full((1, 1)),              # fc2 bias
        ],
        out_specs=full((B_pad, 1)),
        scratch_shapes=[pltpu.VMEM((T, B_pad, G), jnp.float32)],
    )(ids, emb_p,
      params["w_ih_p"], params["b_p"], params["w_hh_p"],
      params["fc1_w_p"], params["fc1_b_p"], params["fc2_w_p"], params["fc2_b"])

    # TODO(synk): for large-batch serving on v7x, add a batch grid axis with
    # dimension_semantics=("parallel",) to use both TensorCores.
    return out[:B].reshape(1, B, 1)


def make_params(key, vocab_size, emb_dim, hidden):
    H = hidden
    assert 4 * H == 128, "gate packing assumes 4*hidden == 128 lanes"
    G = 4 * H
    V_pad = _round_up(vocab_size, 128)
    E_pad = _round_up(emb_dim, 128)
    ks = jax.random.split(key, 8)

    # "Pretrained" embedding matrix (synthetic, deterministic).
    # TODO(synk): real model loads a GloVe .pkl from disk; replaced with a
    # synthetic table since the script must not read files.
    emb = jax.random.normal(ks[0], (vocab_size, emb_dim), jnp.float32) * 0.1
    emb_p = jnp.zeros((V_pad, E_pad), jnp.float32).at[:vocab_size, :emb_dim].set(emb)

    # LSTM weights, stored transposed vs PyTorch ((4H,E)/(4H,H) -> (E,4H)/(H,4H)),
    # gates packed [i|f|g|o] along the 128-lane output dim.
    k_lstm = 1.0 / (hidden ** 0.5)
    w_ih = jax.random.uniform(ks[1], (emb_dim, G), jnp.float32, -k_lstm, k_lstm)
    w_hh = jax.random.uniform(ks[2], (H, G), jnp.float32, -k_lstm, k_lstm)
    b_ih = jax.random.uniform(ks[3], (1, G), jnp.float32, -k_lstm, k_lstm)
    b_hh = jax.random.uniform(ks[4], (1, G), jnp.float32, -k_lstm, k_lstm)

    w_ih_p = jnp.zeros((E_pad, G), jnp.float32).at[:emb_dim, :].set(w_ih)
    w_hh_p = jnp.zeros((G, G), jnp.float32).at[:H, :].set(w_hh)   # pad rows zero
    b_p = b_ih + b_hh

    # fc1: xavier_uniform weight, zero bias (matches Net.initialize()).
    limit1 = (6.0 / (H + H)) ** 0.5
    fc1_w = jax.random.uniform(ks[5], (H, H), jnp.float32, -limit1, limit1)
    fc1_w_p = jnp.zeros((G, G), jnp.float32).at[:H, :H].set(fc1_w)
    fc1_b_p = jnp.zeros((1, G), jnp.float32)

    # fc2: PyTorch default init.
    k_fc2 = 1.0 / (hidden ** 0.5)
    fc2_w = jax.random.uniform(ks[6], (H, 1), jnp.float32, -k_fc2, k_fc2)
    fc2_w_p = jnp.zeros((G, 1), jnp.float32).at[:H, :].set(fc2_w)
    fc2_b = jax.random.uniform(ks[7], (1, 1), jnp.float32, -k_fc2, k_fc2)

    return {
        "emb_p": emb_p, "hidden": H,
        "w_ih_p": w_ih_p, "w_hh_p": w_hh_p, "b_p": b_p,
        "fc1_w_p": fc1_w_p, "fc1_b_p": fc1_b_p,
        "fc2_w_p": fc2_w_p, "fc2_b": fc2_b,
    }


if __name__ == "__main__":
    B, T = 2, 8          # batch, seq_length
    VOCAB = 50           # synthetic vocab (stand-in for the GloVe table)
    E = 300              # embedding_dim from the module
    H = 32               # hidden_layer

    key = jax.random.PRNGKey(0)
    k_params, k_tokens = jax.random.split(key)
    params = make_params(k_params, VOCAB, E, H)
    x_tokens = jax.random.randint(k_tokens, (B, T), 0, VOCAB, dtype=jnp.int32)

    out = net_forward(x_tokens, params)
    out = jax.block_until_ready(out)
    assert out.shape == (1, B, 1)
    assert bool(jnp.all((out >= 0.0) & (out <= 1.0)))
    print("KERNEL_OK")
</pallas_src>

<mosaic_0001>
module attributes {stable_mosaic.version = 11 : i64} {
  func.func @lstm_head_kernel(%arg0: memref<64x1xi32, #tpu.memory_space<vmem>>, %arg1: memref<128x384xf32, #tpu.memory_space<vmem>>, %arg2: memref<384x128xf32, #tpu.memory_space<vmem>>, %arg3: memref<1x128xf32, #tpu.memory_space<vmem>>, %arg4: memref<128x128xf32, #tpu.memory_space<vmem>>, %arg5: memref<128x128xf32, #tpu.memory_space<vmem>>, %arg6: memref<1x128xf32, #tpu.memory_space<vmem>>, %arg7: memref<128x1xf32, #tpu.memory_space<vmem>>, %arg8: memref<1x1xf32, #tpu.memory_space<vmem>>, %arg9: memref<8x1xf32, #tpu.memory_space<vmem>>, %arg10: memref<8x8x128xf32, #tpu.memory_space<vmem>>) attributes {dimension_semantics = [], scalar_prefetch = 0 : i64, scratch_operands = 1 : i64, tpu.core_type = #tpu.core_type<tc>} {
    %c0 = arith.constant 0 : index
    %c0_0 = arith.constant 0 : index
    %0 = vector.load %arg0[%c0, %c0_0] : memref<64x1xi32, #tpu.memory_space<vmem>>, vector<64x1xi32>
    %1 = tpu.iota {dimensions = array<i32: 1>} : vector<64x128xi32>
    %2 = vector.broadcast %0 : vector<64x1xi32> to vector<64x128xi32>
    %3 = arith.cmpi eq, %1, %2 : vector<64x128xi32>
    %cst = arith.constant 1.000000e+00 : f32
    %cst_1 = arith.constant 0.000000e+00 : f32
    %4 = vector.broadcast %cst : f32 to vector<64x128xf32>
    %5 = vector.broadcast %cst_1 : f32 to vector<64x128xf32>
    %6 = arith.select %3, %4, %5 : vector<64x128xi1>, vector<64x128xf32>
    %c0_2 = arith.constant 0 : index
    %c0_3 = arith.constant 0 : index
    %7 = vector.load %arg1[%c0_2, %c0_3] : memref<128x384xf32, #tpu.memory_space<vmem>>, vector<128x384xf32>
    %cst_4 = arith.constant dense<0.000000e+00> : vector<64x384xf32>
    %8 = tpu.matmul %6, %7, %cst_4 {dimension_numbers = #tpu.dot_dimension_numbers<[1], [0], [0], [1], [0, 0, 1, 1], [], []>} : vector<64x128xf32>, vector<128x384xf32>, vector<64x384xf32> -> vector<64x384xf32>
    %c0_5 = arith.constant 0 : index
    %c0_6 = arith.constant 0 : index
    %9 = vector.load %arg2[%c0_5, %c0_6] : memref<384x128xf32, #tpu.memory_space<vmem>>, vector<384x128xf32>
    %cst_7 = arith.constant dense<0.000000e+00> : vector<64x128xf32>
    %10 = tpu.matmul %8, %9, %cst_7 {dimension_numbers = #tpu.dot_dimension_numbers<[1], [0], [0], [1], [0, 0, 1, 1], [], []>} : vector<64x384xf32>, vector<384x128xf32>, vector<64x128xf32> -> vector<64x128xf32>
    %c0_8 = arith.constant 0 : index
    %c0_9 = arith.constant 0 : index
    %11 = vector.load %arg3[%c0_8, %c0_9] : memref<1x128xf32, #tpu.memory_space<vmem>>, vector<1x128xf32>
    %12 = vector.broadcast %11 : vector<1x128xf32> to vector<64x128xf32>
    %13 = arith.addf %10, %12 : vector<64x128xf32>
    %14 = vector.shape_cast %13 : vector<64x128xf32> to vector<8x8x128xf32>
    %c0_10 = arith.constant 0 : index
    %c0_11 = arith.constant 0 : index
    %c0_12 = arith.constant 0 : index
    %15 = vector.load %arg10[%c0_10, %c0_11, %c0_12] : memref<8x8x128xf32, #tpu.memory_space<vmem>>, vector<8x8x128xf32>
    tpu.vector_store %arg10[%c0_10, %c0_11, %c0_12], %14 {strides = array<i32>} : memref<8x8x128xf32, #tpu.memory_space<vmem>>, vector<8x8x128xf32>,
    %16 = tpu.iota {dimensions = array<i32: 1>} : vector<8x128xi32>
    %c64_i32 = arith.constant 64 : i32
    %17 = vector.broadcast %c64_i32 : i32 to vector<8x128xi32>
    %18 = arith.cmpi sge, %16, %17 : vector<8x128xi32>
    %c96_i32 = arith.constant 96 : i32
    %19 = vector.broadcast %c96_i32 : i32 to vector<8x128xi32>
    %20 = arith.cmpi slt, %16, %19 : vector<8x128xi32>
    %21 = arith.andi %18, %20 : vector<8x128xi1>
    %c32_i32 = arith.constant 32 : i32
    %22 = vector.broadcast %c32_i32 : i32 to vector<8x128xi32>
    %23 = arith.cmpi slt, %16, %22 : vector<8x128xi32>
    %cst_13 = arith.constant 0.000000e+00 : f32
    %24 = vector.broadcast %cst_13 : f32 to vector<8x128xf32>
    %cst_14 = arith.constant 0.000000e+00 : f32
    %25 = vector.broadcast %cst_14 : f32 to vector<8x128xf32>
    %c0_15 = arith.constant 0 : index
    %c0_16 = arith.constant 0 : index
    %c0_17 = arith.constant 0 : index
    %26 = vector.load %arg10[%c0_15, %c0_16, %c0_17] : memref<8x8x128xf32, #tpu.memory_space<vmem>>, vector<1x8x128xf32>
    %27 = vector.shape_cast %26 : vector<1x8x128xf32> to vector<8x128xf32>
    %c0_18 = arith.constant 0 : index
    %c0_19 = arith.constant 0 : index
    %28 = vector.load %arg4[%c0_18, %c0_19] : memref<128x128xf32, #tpu.memory_space<vmem>>, vector<128x128xf32>
    %cst_20 = arith.constant dense<0.000000e+00> : vector<8x128xf32>
    %29 = tpu.matmul %24, %28, %cst_20 {dimension_numbers = #tpu.dot_dimension_numbers<[1], [0], [0], [1], [0, 0, 1, 1], [], []>} : vector<8x128xf32>, vector<128x128xf32>, vector<8x128xf32> -> vector<8x128xf32>
    %30 = arith.addf %27, %29 : vector<8x128xf32>
    %31 = math.tanh %30 : vector<8x128xf32>
    %cst_21 = arith.constant 5.000000e-01 : f32
    %32 = vector.broadcast %cst_21 : f32 to vector<8x128xf32>
    %33 = arith.mulf %32, %30 : vector<8x128xf32>
    %34 = math.tanh %33 : vector<8x128xf32>
    %cst_22 = arith.constant 1.000000e+00 : f32
    %35 = vector.broadcast %cst_22 : f32 to vector<8x128xf32>
    %36 = arith.addf %35, %34 : vector<8x128xf32>
    %cst_23 = arith.constant 5.000000e-01 : f32
    %37 = vector.broadcast %cst_23 : f32 to vector<8x128xf32>
    %38 = arith.mulf %37, %36 : vector<8x128xf32>
    %39 = arith.select %21, %31, %38 : vector<8x128xi1>, vector<8x128xf32>
    %c96_i32_24 = arith.constant 96 : i32
    %40 = tpu.dynamic_rotate %39 by %c96_i32_24 dim 1 : vector<8x128xf32>, i32 -> vector<8x128xf32>
    %c64_i32_25 = arith.constant 64 : i32
    %41 = tpu.dynamic_rotate %39 by %c64_i32_25 dim 1 : vector<8x128xf32>, i32 -> vector<8x128xf32>
    %c32_i32_26 = arith.constant 32 : i32
    %42 = tpu.dynamic_rotate %39 by %c32_i32_26 dim 1 : vector<8x128xf32>, i32 -> vector<8x128xf32>
    %43 = arith.mulf %40, %25 : vector<8x128xf32>
    %44 = arith.mulf %39, %41 : vector<8x128xf32>
    %45 = arith.addf %43, %44 : vector<8x128xf32>
    %cst_27 = arith.constant 0.000000e+00 : f32
    %46 = vector.broadcast %cst_27 : f32 to vector<8x128xf32>
    %47 = arith.select %23, %45, %46 : vector<8x128xi1>, vector<8x128xf32>
    %48 = math.tanh %47 : vector<8x128xf32>
    %49 = arith.mulf %42, %48 : vector<8x128xf32>
    %c1 = arith.constant 1 : index
    %c0_28 = arith.constant 0 : index
    %c0_29 = arith.constant 0 : index
    %50 = vector.load %arg10[%c1, %c0_28, %c0_29] : memref<8x8x128xf32, #tpu.memory_space<vmem>>, vector<1x8x128xf32>
    %51 = vector.shape_cast %50 : vector<1x8x128xf32> to vector<8x128xf32>
    %c0_30 = arith.constant 0 : index
    %c0_31 = arith.constant 0 : index
    %52 = vector.load %arg4[%c0_30, %c0_31] : memref<128x128xf32, #tpu.memory_space<vmem>>, vector<128x128xf32>
    %cst_32 = arith.constant dense<0.000000e+00> : vector<8x128xf32>
    %53 = tpu.matmul %49, %52, %cst_32 {dimension_numbers = #tpu.dot_dimension_numbers<[1], [0], [0], [1], [0, 0, 1, 1], [], []>} : vector<8x128xf32>, vector<128x128xf32>, vector<8x128xf32> -> vector<8x128xf32>
    %54 = arith.addf %51, %53 : vector<8x128xf32>
    %55 = math.tanh %54 : vector<8x128xf32>
    %cst_33 = arith.constant 5.000000e-01 : f32
    %56 = vector.broadcast %cst_33 : f32 to vector<8x128xf32>
    %57 = arith.mulf %56, %54 : vector<8x128xf32>
    %58 = math.tanh %57 : vector<8x128xf32>
    %cst_34 = arith.constant 1.000000e+00 : f32
    %59 = vector.broadcast %cst_34 : f32 to vector<8x128xf32>
    %60 = arith.addf %59, %58 : vector<8x128xf32>
    %cst_35 = arith.constant 5.000000e-01 : f32
    %61 = vector.broadcast %cst_35 : f32 to vector<8x128xf32>
    %62 = arith.mulf %61, %60 : vector<8x128xf32>
    %63 = arith.select %21, %55, %62 : vector<8x128xi1>, vector<8x128xf32>
    %c96_i32_36 = arith.constant 96 : i32
    %64 = tpu.dynamic_rotate %63 by %c96_i32_36 dim 1 : vector<8x128xf32>, i32 -> vector<8x128xf32>
    %c64_i32_37 = arith.constant 64 : i32
    %65 = tpu.dynamic_rotate %63 by %c64_i32_37 dim 1 : vector<8x128xf32>, i32 -> vector<8x128xf32>
    %c32_i32_38 = arith.constant 32 : i32
    %66 = tpu.dynamic_rotate %63 by %c32_i32_38 dim 1 : vector<8x128xf32>, i32 -> vector<8x128xf32>
    %67 = arith.mulf %64, %47 : vector<8x128xf32>
    %68 = arith.mulf %63, %65 : vector<8x128xf32>
    %69 = arith.addf %67, %68 : vector<8x128xf32>
    %cst_39 = arith.constant 0.000000e+00 : f32
    %70 = vector.broadcast %cst_39 : f32 to vector<8x128xf32>
    %71 = arith.select %23, %69, %70 : vector<8x128xi1>, vector<8x128xf32>
    %72 = math.tanh %71 : vector<8x128xf32>
    %73 = arith.mulf %66, %72 : vector<8x128xf32>
    %c2 = arith.constant 2 : index
    %c0_40 = arith.constant 0 : index
    %c0_41 = arith.constant 0 : index
    %74 = vector.load %arg10[%c2, %c0_40, %c0_41] : memref<8x8x128xf32, #tpu.memory_space<vmem>>, vector<1x8x128xf32>
    %75 = vector.shape_cast %74 : vector<1x8x128xf32> to vector<8x128xf32>
    %c0_42 = arith.constant 0 : index
    %c0_43 = arith.constant 0 : index
    %76 = vector.load %arg4[%c0_42, %c0_43] : memref<128x128xf32, #tpu.memory_space<vmem>>, vector<128x128xf32>
    %cst_44 = arith.constant dense<0.000000e+00> : vector<8x128xf32>
    %77 = tpu.matmul %73, %76, %cst_44 {dimension_numbers = #tpu.dot_dimension_numbers<[1], [0], [0], [1], [0, 0, 1, 1], [], []>} : vector<8x128xf32>, vector<128x128xf32>, vector<8x128xf32> -> vector<8x128xf32>
    %78 = arith.addf %75, %77 : vector<8x128xf32>
    %79 = math.tanh %78 : vector<8x128xf32>
    %cst_45 = arith.constant 5.000000e-01 : f32
    %80 = vector.broadcast %cst_45 : f32 to vector<8x128xf32>
    %81 = arith.mulf %80, %78 : vector<8x128xf32>
    %82 = math.tanh %81 : vector<8x128xf32>
    %cst_46 = arith.constant 1.000000e+00 : f32
    %83 = vector.broadcast %cst_46 : f32 to vector<8x128xf32>
    %84 = arith.addf %83, %82 : vector<8x128xf32>
    %cst_47 = arith.constant 5.000000e-01 : f32
    %85 = vector.broadcast %cst_47 : f32 to vector<8x128xf32>
    %86 = arith.mulf %85, %84 : vector<8x128xf32>
    %87 = arith.select %21, %79, %86 : vector<8x128xi1>, vector<8x128xf32>
    %c96_i32_48 = arith.constant 96 : i32
    %88 = tpu.dynamic_rotate %87 by %c96_i32_48 dim 1 : vector<8x128xf32>, i32 -> vector<8x128xf32>
    %c64_i32_49 = arith.constant 64 : i32
    %89 = tpu.dynamic_rotate %87 by %c64_i32_49 dim 1 : vector<8x128xf32>, i32 -> vector<8x128xf32>
    %c32_i32_50 = arith.constant 32 : i32
    %90 = tpu.dynamic_rotate %87 by %c32_i32_50 dim 1 : vector<8x128xf32>, i32 -> vector<8x128xf32>
    %91 = arith.mulf %88, %71 : vector<8x128xf32>
    %92 = arith.mulf %87, %89 : vector<8x128xf32>
    %93 = arith.addf %91, %92 : vector<8x128xf32>
    %cst_51 = arith.constant 0.000000e+00 : f32
    %94 = vector.broadcast %cst_51 : f32 to vector<8x128xf32>
    %95 = arith.select %23, %93, %94 : vector<8x128xi1>, vector<8x128xf32>
    %96 = math.tanh %95 : vector<8x128xf32>
    %97 = arith.mulf %90, %96 : vector<8x128xf32>
    %c3 = arith.constant 3 : index
    %c0_52 = arith.constant 0 : index
    %c0_53 = arith.constant 0 : index
    %98 = vector.load %arg10[%c3, %c0_52, %c0_53] : memref<8x8x128xf32, #tpu.memory_space<vmem>>, vector<1x8x128xf32>
    %99 = vector.shape_cast %98 : vector<1x8x128xf32> to vector<8x128xf32>
    %c0_54 = arith.constant 0 : index
    %c0_55 = arith.constant 0 : index
    %100 = vector.load %arg4[%c0_54, %c0_55] : memref<128x128xf32, #tpu.memory_space<vmem>>, vector<128x128xf32>
    %cst_56 = arith.constant dense<0.000000e+00> : vector<8x128xf32>
    %101 = tpu.matmul %97, %100, %cst_56 {dimension_numbers = #tpu.dot_dimension_numbers<[1], [0], [0], [1], [0, 0, 1, 1], [], []>} : vector<8x128xf32>, vector<128x128xf32>, vector<8x128xf32> -> vector<8x128xf32>
    %102 = arith.addf %99, %101 : vector<8x128xf32>
    %103 = math.tanh %102 : vector<8x128xf32>
    %cst_57 = arith.constant 5.000000e-01 : f32
    %104 = vector.broadcast %cst_57 : f32 to vector<8x128xf32>
    %105 = arith.mulf %104, %102 : vector<8x128xf32>
    %106 = math.tanh %105 : vector<8x128xf32>
    %cst_58 = arith.constant 1.000000e+00 : f32
    %107 = vector.broadcast %cst_58 : f32 to vector<8x128xf32>
    %108 = arith.addf %107, %106 : vector<8x128xf32>
    %cst_59 = arith.constant 5.000000e-01 : f32
    %109 = vector.broadcast %cst_59 : f32 to vector<8x128xf32>
    %110 = arith.mulf %109, %108 : vector<8x128xf32>
    %111 = arith.select %21, %103, %110 : vector<8x128xi1>, vector<8x128xf32>
    %c96_i32_60 = arith.constant 96 : i32
    %112 = tpu.dynamic_rotate %111 by %c96_i32_60 dim 1 : vector<8x128xf32>, i32 -> vector<8x128xf32>
    %c64_i32_61 = arith.constant 64 : i32
    %113 = tpu.dynamic_rotate %111 by %c64_i32_61 dim 1 : vector<8x128xf32>, i32 -> vector<8x128xf32>
    %c32_i32_62 = arith.constant 32 : i32
    %114 = tpu.dynamic_rotate %111 by %c32_i32_62 dim 1 : vector<8x128xf32>, i32 -> vector<8x128xf32>
    %115 = arith.mulf %112, %95 : vector<8x128xf32>
    %116 = arith.mulf %111, %113 : vector<8x128xf32>
    %117 = arith.addf %115, %116 : vector<8x128xf32>
    %cst_63 = arith.constant 0.000000e+00 : f32
    %118 = vector.broadcast %cst_63 : f32 to vector<8x128xf32>
    %119 = arith.select %23, %117, %118 : vector<8x128xi1>, vector<8x128xf32>
    %120 = math.tanh %119 : vector<8x128xf32>
    %121 = arith.mulf %114, %120 : vector<8x128xf32>
    %c4 = arith.constant 4 : index
    %c0_64 = arith.constant 0 : index
    %c0_65 = arith.constant 0 : index
    %122 = vector.load %arg10[%c4, %c0_64, %c0_65] : memref<8x8x128xf32, #tpu.memory_space<vmem>>, vector<1x8x128xf32>
    %123 = vector.shape_cast %122 : vector<1x8x128xf32> to vector<8x128xf32>
    %c0_66 = arith.constant 0 : index
    %c0_67 = arith.constant 0 : index
    %124 = vector.load %arg4[%c0_66, %c0_67] : memref<128x128xf32, #tpu.memory_space<vmem>>, vector<128x128xf32>
    %cst_68 = arith.constant dense<0.000000e+00> : vector<8x128xf32>
    %125 = tpu.matmul %121, %124, %cst_68 {dimension_numbers = #tpu.dot_dimension_numbers<[1], [0], [0], [1], [0, 0, 1, 1], [], []>} : vector<8x128xf32>, vector<128x128xf32>, vector<8x128xf32> -> vector<8x128xf32>
    %126 = arith.addf %123, %125 : vector<8x128xf32>
    %127 = math.tanh %126 : vector<8x128xf32>
    %cst_69 = arith.constant 5.000000e-01 : f32
    %128 = vector.broadcast %cst_69 : f32 to vector<8x128xf32>
    %129 = arith.mulf %128, %126 : vector<8x128xf32>
    %130 = math.tanh %129 : vector<8x128xf32>
    %cst_70 = arith.constant 1.000000e+00 : f32
    %131 = vector.broadcast %cst_70 : f32 to vector<8x128xf32>
    %132 = arith.addf %131, %130 : vector<8x128xf32>
    %cst_71 = arith.constant 5.000000e-01 : f32
    %133 = vector.broadcast %cst_71 : f32 to vector<8x128xf32>
    %134 = arith.mulf %133, %132 : vector<8x128xf32>
    %135 = arith.select %21, %127, %134 : vector<8x128xi1>, vector<8x128xf32>
    %c96_i32_72 = arith.constant 96 : i32
    %136 = tpu.dynamic_rotate %135 by %c96_i32_72 dim 1 : vector<8x128xf32>, i32 -> vector<8x128xf32>
    %c64_i32_73 = arith.constant 64 : i32
    %137 = tpu.dynamic_rotate %135 by %c64_i32_73 dim 1 : vector<8x128xf32>, i32 -> vector<8x128xf32>
    %c32_i32_74 = arith.constant 32 : i32
    %138 = tpu.dynamic_rotate %135 by %c32_i32_74 dim 1 : vector<8x128xf32>, i32 -> vector<8x128xf32>
    %139 = arith.mulf %136, %119 : vector<8x128xf32>
    %140 = arith.mulf %135, %137 : vector<8x128xf32>
    %141 = arith.addf %139, %140 : vector<8x128xf32>
    %cst_75 = arith.constant 0.000000e+00 : f32
    %142 = vector.broadcast %cst_75 : f32 to vector<8x128xf32>
    %143 = arith.select %23, %141, %142 : vector<8x128xi1>, vector<8x128xf32>
    %144 = math.tanh %143 : vector<8x128xf32>
    %145 = arith.mulf %138, %144 : vector<8x128xf32>
    %c5 = arith.constant 5 : index
    %c0_76 = arith.constant 0 : index
    %c0_77 = arith.constant 0 : index
    %146 = vector.load %arg10[%c5, %c0_76, %c0_77] : memref<8x8x128xf32, #tpu.memory_space<vmem>>, vector<1x8x128xf32>
    %147 = vector.shape_cast %146 : vector<1x8x128xf32> to vector<8x128xf32>
    %c0_78 = arith.constant 0 : index
    %c0_79 = arith.constant 0 : index
    %148 = vector.load %arg4[%c0_78, %c0_79] : memref<128x128xf32, #tpu.memory_space<vmem>>, vector<128x128xf32>
    %cst_80 = arith.constant dense<0.000000e+00> : vector<8x128xf32>
    %149 = tpu.matmul %145, %148, %cst_80 {dimension_numbers = #tpu.dot_dimension_numbers<[1], [0], [0], [1], [0, 0, 1, 1], [], []>} : vector<8x128xf32>, vector<128x128xf32>, vector<8x128xf32> -> vector<8x128xf32>
    %150 = arith.addf %147, %149 : vector<8x128xf32>
    %151 = math.tanh %150 : vector<8x128xf32>
    %cst_81 = arith.constant 5.000000e-01 : f32
    %152 = vector.broadcast %cst_81 : f32 to vector<8x128xf32>
    %153 = arith.mulf %152, %150 : vector<8x128xf32>
    %154 = math.tanh %153 : vector<8x128xf32>
    %cst_82 = arith.constant 1.000000e+00 : f32
    %155 = vector.broadcast %cst_82 : f32 to vector<8x128xf32>
    %156 = arith.addf %155, %154 : vector<8x128xf32>
    %cst_83 = arith.constant 5.000000e-01 : f32
    %157 = vector.broadcast %cst_83 : f32 to vector<8x128xf32>
    %158 = arith.mulf %157, %156 : vector<8x128xf32>
    %159 = arith.select %21, %151, %158 : vector<8x128xi1>, vector<8x128xf32>
    %c96_i32_84 = arith.constant 96 : i32
    %160 = tpu.dynamic_rotate %159 by %c96_i32_84 dim 1 : vector<8x128xf32>, i32 -> vector<8x128xf32>
    %c64_i32_85 = arith.constant 64 : i32
    %161 = tpu.dynamic_rotate %159 by %c64_i32_85 dim 1 : vector<8x128xf32>, i32 -> vector<8x128xf32>
    %c32_i32_86 = arith.constant 32 : i32
    %162 = tpu.dynamic_rotate %159 by %c32_i32_86 dim 1 : vector<8x128xf32>, i32 -> vector<8x128xf32>
    %163 = arith.mulf %160, %143 : vector<8x128xf32>
    %164 = arith.mulf %159, %161 : vector<8x128xf32>
    %165 = arith.addf %163, %164 : vector<8x128xf32>
    %cst_87 = arith.constant 0.000000e+00 : f32
    %166 = vector.broadcast %cst_87 : f32 to vector<8x128xf32>
    %167 = arith.select %23, %165, %166 : vector<8x128xi1>, vector<8x128xf32>
    %168 = math.tanh %167 : vector<8x128xf32>
    %169 = arith.mulf %162, %168 : vector<8x128xf32>
    %c6 = arith.constant 6 : index
    %c0_88 = arith.constant 0 : index
    %c0_89 = arith.constant 0 : index
    %170 = vector.load %arg10[%c6, %c0_88, %c0_89] : memref<8x8x128xf32, #tpu.memory_space<vmem>>, vector<1x8x128xf32>
    %171 = vector.shape_cast %170 : vector<1x8x128xf32> to vector<8x128xf32>
    %c0_90 = arith.constant 0 : index
    %c0_91 = arith.constant 0 : index
    %172 = vector.load %arg4[%c0_90, %c0_91] : memref<128x128xf32, #tpu.memory_space<vmem>>, vector<128x128xf32>
    %cst_92 = arith.constant dense<0.000000e+00> : vector<8x128xf32>
    %173 = tpu.matmul %169, %172, %cst_92 {dimension_numbers = #tpu.dot_dimension_numbers<[1], [0], [0], [1], [0, 0, 1, 1], [], []>} : vector<8x128xf32>, vector<128x128xf32>, vector<8x128xf32> -> vector<8x128xf32>
    %174 = arith.addf %171, %173 : vector<8x128xf32>
    %175 = math.tanh %174 : vector<8x128xf32>
    %cst_93 = arith.constant 5.000000e-01 : f32
    %176 = vector.broadcast %cst_93 : f32 to vector<8x128xf32>
    %177 = arith.mulf %176, %174 : vector<8x128xf32>
    %178 = math.tanh %177 : vector<8x128xf32>
    %cst_94 = arith.constant 1.000000e+00 : f32
    %179 = vector.broadcast %cst_94 : f32 to vector<8x128xf32>
    %180 = arith.addf %179, %178 : vector<8x128xf32>
    %cst_95 = arith.constant 5.000000e-01 : f32
    %181 = vector.broadcast %cst_95 : f32 to vector<8x128xf32>
    %182 = arith.mulf %181, %180 : vector<8x128xf32>
    %183 = arith.select %21, %175, %182 : vector<8x128xi1>, vector<8x128xf32>
    %c96_i32_96 = arith.constant 96 : i32
    %184 = tpu.dynamic_rotate %183 by %c96_i32_96 dim 1 : vector<8x128xf32>, i32 -> vector<8x128xf32>
    %c64_i32_97 = arith.constant 64 : i32
    %185 = tpu.dynamic_rotate %183 by %c64_i32_97 dim 1 : vector<8x128xf32>, i32 -> vector<8x128xf32>
    %c32_i32_98 = arith.constant 32 : i32
    %186 = tpu.dynamic_rotate %183 by %c32_i32_98 dim 1 : vector<8x128xf32>, i32 -> vector<8x128xf32>
    %187 = arith.mulf %184, %167 : vector<8x128xf32>
    %188 = arith.mulf %183, %185 : vector<8x128xf32>
    %189 = arith.addf %187, %188 : vector<8x128xf32>
    %cst_99 = arith.constant 0.000000e+00 : f32
    %190 = vector.broadcast %cst_99 : f32 to vector<8x128xf32>
    %191 = arith.select %23, %189, %190 : vector<8x128xi1>, vector<8x128xf32>
    %192 = math.tanh %191 : vector<8x128xf32>
    %193 = arith.mulf %186, %192 : vector<8x128xf32>
    %c7 = arith.constant 7 : index
    %c0_100 = arith.constant 0 : index
    %c0_101 = arith.constant 0 : index
    %194 = vector.load %arg10[%c7, %c0_100, %c0_101] : memref<8x8x128xf32, #tpu.memory_space<vmem>>, vector<1x8x128xf32>
    %195 = vector.shape_cast %194 : vector<1x8x128xf32> to vector<8x128xf32>
    %c0_102 = arith.constant 0 : index
    %c0_103 = arith.constant 0 : index
    %196 = vector.load %arg4[%c0_102, %c0_103] : memref<128x128xf32, #tpu.memory_space<vmem>>, vector<128x128xf32>
    %cst_104 = arith.constant dense<0.000000e+00> : vector<8x128xf32>
    %197 = tpu.matmul %193, %196, %cst_104 {dimension_numbers = #tpu.dot_dimension_numbers<[1], [0], [0], [1], [0, 0, 1, 1], [], []>} : vector<8x128xf32>, vector<128x128xf32>, vector<8x128xf32> -> vector<8x128xf32>
    %198 = arith.addf %195, %197 : vector<8x128xf32>
    %199 = math.tanh %198 : vector<8x128xf32>
    %cst_105 = arith.constant 5.000000e-01 : f32
    %200 = vector.broadcast %cst_105 : f32 to vector<8x128xf32>
    %201 = arith.mulf %200, %198 : vector<8x128xf32>
    %202 = math.tanh %201 : vector<8x128xf32>
    %cst_106 = arith.constant 1.000000e+00 : f32
    %203 = vector.broadcast %cst_106 : f32 to vector<8x128xf32>
    %204 = arith.addf %203, %202 : vector<8x128xf32>
    %cst_107 = arith.constant 5.000000e-01 : f32
    %205 = vector.broadcast %cst_107 : f32 to vector<8x128xf32>
    %206 = arith.mulf %205, %204 : vector<8x128xf32>
    %207 = arith.select %21, %199, %206 : vector<8x128xi1>, vector<8x128xf32>
    %c96_i32_108 = arith.constant 96 : i32
    %208 = tpu.dynamic_rotate %207 by %c96_i32_108 dim 1 : vector<8x128xf32>, i32 -> vector<8x128xf32>
    %c64_i32_109 = arith.constant 64 : i32
    %209 = tpu.dynamic_rotate %207 by %c64_i32_109 dim 1 : vector<8x128xf32>, i32 -> vector<8x128xf32>
    %c32_i32_110 = arith.constant 32 : i32
    %210 = tpu.dynamic_rotate %207 by %c32_i32_110 dim 1 : vector<8x128xf32>, i32 -> vector<8x128xf32>
    %211 = arith.mulf %208, %191 : vector<8x128xf32>
    %212 = arith.mulf %207, %209 : vector<8x128xf32>
    %213 = arith.addf %211, %212 : vector<8x128xf32>
    %cst_111 = arith.constant 0.000000e+00 : f32
    %214 = vector.broadcast %cst_111 : f32 to vector<8x128xf32>
    %215 = arith.select %23, %213, %214 : vector<8x128xi1>, vector<8x128xf32>
    %216 = math.tanh %215 : vector<8x128xf32>
    %217 = arith.mulf %210, %216 : vector<8x128xf32>
    %c0_112 = arith.constant 0 : index
    %c0_113 = arith.constant 0 : index
    %218 = vector.load %arg5[%c0_112, %c0_113] : memref<128x128xf32, #tpu.memory_space<vmem>>, vector<128x128xf32>
    %cst_114 = arith.constant dense<0.000000e+00> : vector<8x128xf32>
    %219 = tpu.matmul %217, %218, %cst_114 {dimension_numbers = #tpu.dot_dimension_numbers<[1], [0], [0], [1], [0, 0, 1, 1], [], []>} : vector<8x128xf32>, vector<128x128xf32>, vector<8x128xf32> -> vector<8x128xf32>
    %c0_115 = arith.constant 0 : index
    %c0_116 = arith.constant 0 : index
    %220 = vector.load %arg6[%c0_115, %c0_116] : memref<1x128xf32, #tpu.memory_space<vmem>>, vector<1x128xf32>
    %221 = vector.broadcast %220 : vector<1x128xf32> to vector<8x128xf32>
    %222 = arith.addf %219, %221 : vector<8x128xf32>
    %223 = math.tanh %222 : vector<8x128xf32>
    %c0_117 = arith.constant 0 : index
    %c0_118 = arith.constant 0 : index
    %224 = vector.load %arg7[%c0_117, %c0_118] : memref<128x1xf32, #tpu.memory_space<vmem>>, vector<128x1xf32>
    %cst_119 = arith.constant dense<0.000000e+00> : vector<8x1xf32>
    %225 = tpu.matmul %223, %224, %cst_119 {dimension_numbers = #tpu.dot_dimension_numbers<[1], [0], [0], [1], [0, 0, 1, 1], [], []>} : vector<8x128xf32>, vector<128x1xf32>, vector<8x1xf32> -> vector<8x1xf32>
    %c0_120 = arith.constant 0 : index
    %c0_121 = arith.constant 0 : index
    %226 = vector.load %arg8[%c0_120, %c0_121] : memref<1x1xf32, #tpu.memory_space<vmem>>, vector<1x1xf32>
    %227 = vector.broadcast %226 : vector<1x1xf32> to vector<8x1xf32>
    %228 = arith.addf %225, %227 : vector<8x1xf32>
    %cst_122 = arith.constant 5.000000e-01 : f32
    %229 = vector.broadcast %cst_122 : f32 to vector<8x1xf32>
    %230 = arith.mulf %229, %228 : vector<8x1xf32>
    %231 = math.tanh %230 : vector<8x1xf32>
    %cst_123 = arith.constant 1.000000e+00 : f32
    %232 = vector.broadcast %cst_123 : f32 to vector<8x1xf32>
    %233 = arith.addf %232, %231 : vector<8x1xf32>
    %cst_124 = arith.constant 5.000000e-01 : f32
    %234 = vector.broadcast %cst_124 : f32 to vector<8x1xf32>
    %235 = arith.mulf %234, %233 : vector<8x1xf32>
    %c0_125 = arith.constant 0 : index
    %c0_126 = arith.constant 0 : index
    %236 = vector.load %arg9[%c0_125, %c0_126] : memref<8x1xf32, #tpu.memory_space<vmem>>, vector<8x1xf32>
    tpu.vector_store %arg9[%c0_125, %c0_126], %235 {strides = array<i32>} : memref<8x1xf32, #tpu.memory_space<vmem>>, vector<8x1xf32>,
    return
  }
}

</mosaic_0001>

<llo_original>
// kernel: tpu_custom_call.1
$region0: #{tpu_custom_call.1}
  #allocation0 [shape = 'u32[]', space=smem, size = 0x4, offset = 0x4, fixed_abs, tag = 'smem constant byte address 0x4 - core index']
  #allocation1 [shape = 'u32[72,128]{1,0:T(1,128)}', space=vmem, size = 0x9000, scoped, tag = 'internal scratch']
  #allocation2 [shape = 'f32[8,8,128]{2,1,0:T(8,128)}', space=vmem, size = 0x8000, scoped, tag = 'scratch operand']
  #allocation3 [shape = 'f32[1,1]{1,0:T(1,128)S(1)}', space=vmem, size = 0x200, scoped, tag = 'scoped memory for tpu_custom_call.1']
  %s0 = inlined_call_operand.vmem [shape: s32[64,1], index: 0, kind: input, shape index: {}]
  %s1 = inlined_call_operand.hbm [shape: f32[128,384], index: 1, kind: input, shape index: {}]
  %s2 = inlined_call_operand.hbm [shape: f32[384,128], index: 2, kind: input, shape index: {}]
  %s3 = inlined_call_operand.vmem [shape: f32[1,128], index: 3, kind: input, shape index: {}]
  %s4 = inlined_call_operand.vmem [shape: f32[128,128], index: 4, kind: input, shape index: {}]
  %s5 = inlined_call_operand.hbm [shape: f32[128,128], index: 5, kind: input, shape index: {}]
  %s6 = inlined_call_operand.vmem [shape: f32[1,128], index: 6, kind: input, shape index: {}]
  %s7 = inlined_call_operand.vmem [shape: f32[128,1], index: 7, kind: input, shape index: {}]
  %s8 = inlined_call_operand.<no memory space> [shape: f32[1,1], index: 8, kind: input, shape index: {}]
  %s9 = inlined_call_operand.vmem [shape: f32[8,1], index: 9, kind: output, shape index: {}]
  %s10 = sld [smem:[#allocation0]]
  $region58: #{tpu_custom_call.1} parent=0
    _
  %s12 = ssub.s32 1, %s10
  %s13 = scalar_select 0, %s12, %s10
  %v14 = vstv %s8
  %15 = vst [vmem:[#allocation3] sm:$0x1] %v14
  $region1: #{tpu_custom_call.1} parent=0
    #allocation4 [shape = 'u8[196608]{0}', space=vmem, size = 0x30000, scoped, tag = 'input window, operand 1, single buffered']
    #allocation5 [shape = 's32[1]{0}', space=sflag, size = 0x4, scoped, tag = 'scoped memory for tpu_custom_call.1']
    #allocation6 [shape = 'u8[196608]{0}', space=vmem, size = 0x30000, scoped, tag = 'input window, operand 2, single buffered']
    #allocation7 [shape = 's32[1]{0}', space=sflag, size = 0x4, scoped, tag = 'scoped memory for tpu_custom_call.1']
    #allocation8 [shape = 'u8[65536]{0}', space=vmem, size = 0x10000, scoped, tag = 'input window, operand 5, single buffered']
    %16 = vsyncpa [#allocation5], 0
    %17 = vsyncpa [#allocation7], 0
    // Predicated region
    $region2: #{tpu_custom_call.1} parent=1 // pred_check
      _
    $region3: #{tpu_custom_call.1} parent=1 // pred_check_branch
      %19 = sbr.rel (0) target = $region5
    $region4: #{tpu_custom_call.1} parent=1 // pred_region
      _
    $region5: #{tpu_custom_call.1} parent=1 // pred_fallthru
      _
    // Predicated region
    $region6: #{tpu_custom_call.1} parent=1 // pred_check
      _
    $region7: #{tpu_custom_call.1} parent=1 // pred_check_branch
      %21 = sbr.rel (0) target = $region9
    $region8: #{tpu_custom_call.1} parent=1 // pred_region
      %23 = vsyncadd [#allocation5], 0
      %s24 = sshll.u32 %s1, 4
      %s25 = int_to_ptr.hbm [resolvable:$true] %s24
      %s26 = sshll.u32 [#allocation4], 4
      %s27 = int_to_ptr.vmem [resolvable:$true] %s26
      %32 = dma.hbm_to_vmem [thread:$0]  %s25, 6144, %s27, [#allocation5], 384, 384, 24
    $region9: #{tpu_custom_call.1} parent=1 // pred_fallthru
      _
    // Predicated region
    $region10: #{tpu_custom_call.1} parent=1 // pred_check
      _
    $region11: #{tpu_custom_call.1} parent=1 // pred_check_branch
      %34 = sbr.rel (0) target = $region13
    $region12: #{tpu_custom_call.1} parent=1 // pred_region
      %36 = vsyncadd [#allocation7], 0
      %s37 = sshll.u32 %s2, 4
      %s38 = int_to_ptr.hbm [resolvable:$true] %s37
      %s39 = sshll.u32 [#allocation6], 4
      %s40 = int_to_ptr.vmem [resolvable:$true] %s39
      %45 = dma.hbm_to_vmem [thread:$0]  %s38, 6144, %s40, [#allocation7], 128, 128, 8
    $region13: #{tpu_custom_call.1} parent=1 // pred_fallthru
      _
    // Predicated region
    $region14: #{tpu_custom_call.1} parent=1 // pred_check
      _
    $region15: #{tpu_custom_call.1} parent=1 // pred_check_branch
      %47 = sbr.rel (0) target = $region17
    $region16: #{tpu_custom_call.1} parent=1 // pred_region
      _
    $region17: #{tpu_custom_call.1} parent=1 // pred_fallthru
      _
    // Predicated region
    $region18: #{tpu_custom_call.1} parent=1 // pred_check
      _
    $region19: #{tpu_custom_call.1} parent=1 // pred_check_branch
      %49 = sbr.rel (0) target = $region21
    $region20: #{tpu_custom_call.1} parent=1 // pred_region
      _
    $region21: #{tpu_custom_call.1} parent=1 // pred_fallthru
      _
    // Predicated region
    $region22: #{tpu_custom_call.1} parent=1 // pred_check
      _
    $region23: #{tpu_custom_call.1} parent=1 // pred_check_branch
      %51 = sbr.rel (0) target = $region25
    $region24: #{tpu_custom_call.1} parent=1 // pred_region
      %53 = vsyncadd [#allocation7], 0
      %s54 = sshll.u32 %s5, 4
      %s55 = int_to_ptr.hbm [resolvable:$true] %s54
      %s56 = sshll.u32 [#allocation8], 4
      %s57 = int_to_ptr.vmem [resolvable:$true] %s56
      %62 = dma.hbm_to_vmem [thread:$0]  %s55, 2048, %s57, [#allocation7], 128, 128, 8
    $region25: #{tpu_custom_call.1} parent=1 // pred_fallthru
      _
    // Predicated region
    $region26: #{tpu_custom_call.1} parent=1 // pred_check
      _
    $region27: #{tpu_custom_call.1} parent=1 // pred_check_branch
      %64 = sbr.rel (0) target = $region29
    $region28: #{tpu_custom_call.1} parent=1 // pred_region
      _
    $region29: #{tpu_custom_call.1} parent=1 // pred_fallthru
      _
    // Predicated region
    $region30: #{tpu_custom_call.1} parent=1 // pred_check
      _
    $region31: #{tpu_custom_call.1} parent=1 // pred_check_branch
      %66 = sbr.rel (0) target = $region33
    $region32: #{tpu_custom_call.1} parent=1 // pred_region
      _
    $region33: #{tpu_custom_call.1} parent=1 // pred_fallthru
      _
    // Predicated region
    $region34: #{tpu_custom_call.1} parent=1 // pred_check
      _
    $region35: #{tpu_custom_call.1} parent=1 // pred_check_branch
      %68 = sbr.rel (0) target = $region37
    $region36: #{tpu_custom_call.1} parent=1 // pred_region
      _
    $region37: #{tpu_custom_call.1} parent=1 // pred_fallthru
      _
    // Predicated region
    $region38: #{tpu_custom_call.1} parent=1 // pred_check
      _
    $region39: #{tpu_custom_call.1} parent=1 // pred_check_branch
      %70 = sbr.rel (0) target = $region41
    $region40: #{tpu_custom_call.1} parent=1 // pred_region
      %72 = dma.done [#allocation5], 6144
    $region41: #{tpu_custom_call.1} parent=1 // pred_fallthru
      _
    // Predicated region
    $region42: #{tpu_custom_call.1} parent=1 // pred_check
      _
    $region43: #{tpu_custom_call.1} parent=1 // pred_check_branch
      %74 = sbr.rel (0) target = $region45
    $region44: #{tpu_custom_call.1} parent=1 // pred_region
      %76 = dma.done [#allocation7], 6144
    $region45: #{tpu_custom_call.1} parent=1 // pred_fallthru
      _
    // Predicated region
    $region46: #{tpu_custom_call.1} parent=1 // pred_check
      _
    $region47: #{tpu_custom_call.1} parent=1 // pred_check_branch
      %78 = sbr.rel (0) target = $region49
    $region48: #{tpu_custom_call.1} parent=1 // pred_region
      %80 = dma.done [#allocation7], 2048
    $region49: #{tpu_custom_call.1} parent=1 // pred_fallthru
      _
    %v81 = vld [vmem:[%s0] sm:$0xff]
    %v82 = vld [vmem:[%s0 + $0x8] sm:$0xff]
    %v83 = vld [vmem:[%s0 + $0x10] sm:$0xff]
    %v84 = vld [vmem:[%s0 + $0x18] sm:$0xff]
    %v85 = vld [vmem:[%s0 + $0x20] sm:$0xff]
    %v86 = vld [vmem:[%s0 + $0x28] sm:$0xff]
    %v87 = vld [vmem:[%s0 + $0x30] sm:$0xff]
    %v88 = vld [vmem:[%s0 + $0x38] sm:$0xff]
    %v89 = vlaneseq
    %v90 = vand.u32 %v89, 127
    %91 = vset.pattern.permute.xlu0 0
    %92 = vperm.xlu0 %91, %v81
    %v93 = vpop.permute.xlu0 %92
    %94 = vset.pattern.permute.xlu0 0
    %95 = vperm.xlu0 %94, %v82
    %v96 = vpop.permute.xlu0 %95
    %97 = vset.pattern.permute.xlu0 0
    %98 = vperm.xlu0 %97, %v83
    %v99 = vpop.permute.xlu0 %98
    %100 = vset.pattern.permute.xlu0 0
    %101 = vperm.xlu0 %100, %v84
    %v102 = vpop.permute.xlu0 %101
    %103 = vset.pattern.permute.xlu0 0
    %104 = vperm.xlu0 %103, %v85
    %v105 = vpop.permute.xlu0 %104
    %106 = vset.pattern.permute.xlu0 0
    %107 = vperm.xlu0 %106, %v86
    %v108 = vpop.permute.xlu0 %107
    %109 = vset.pattern.permute.xlu0 0
    %110 = vperm.xlu0 %109, %v87
    %v111 = vpop.permute.xlu0 %110
    %112 = vset.pattern.permute.xlu0 0
    %113 = vperm.xlu0 %112, %v88
    %v114 = vpop.permute.xlu0 %113
    %vm115 = vcmp.eq.s32.totalorder %v90, %v93
    %vm116 = vcmp.eq.s32.totalorder %v90, %v96
    %vm117 = vcmp.eq.s32.totalorder %v90, %v99
    %vm118 = vcmp.eq.s32.totalorder %v90, %v102
    %vm119 = vcmp.eq.s32.totalorder %v90, %v105
    %vm120 = vcmp.eq.s32.totalorder %v90, %v108
    %vm121 = vcmp.eq.s32.totalorder %v90, %v111
    %vm122 = vcmp.eq.s32.totalorder %v90, %v114
    %v123 = vsel %vm115, 1.0, 0.0
    %v124 = vsel %vm116, 1.0, 0.0
    %v125 = vsel %vm117, 1.0, 0.0
    %v126 = vsel %vm118, 1.0, 0.0
    %v127 = vsel %vm119, 1.0, 0.0
    %v128 = vsel %vm120, 1.0, 0.0
    %v129 = vsel %vm121, 1.0, 0.0
    %v130 = vsel %vm122, 1.0, 0.0
    %v131 = vld [vmem:[#allocation4] sm:$0xff]
    %v132 = vld [vmem:[#allocation4 + $0x8] sm:$0xff]
    %v133 = vld [vmem:[#allocation4 + $0x10] sm:$0xff]
    %v134 = vld [vmem:[#allocation4 + $0x18] sm:$0xff]
    %v135 = vld [vmem:[#allocation4 + $0x20] sm:$0xff]
    %v136 = vld [vmem:[#allocation4 + $0x28] sm:$0xff]
    %v137 = vld [vmem:[#allocation4 + $0x30] sm:$0xff]
    %v138 = vld [vmem:[#allocation4 + $0x38] sm:$0xff]
    %v139 = vld [vmem:[#allocation4 + $0x40] sm:$0xff]
    %v140 = vld [vmem:[#allocation4 + $0x48] sm:$0xff]
    %v141 = vld [vmem:[#allocation4 + $0x50] sm:$0xff]
    %v142 = vld [vmem:[#allocation4 + $0x58] sm:$0xff]
    %v143 = vld [vmem:[#allocation4 + $0x60] sm:$0xff]
    %v144 = vld [vmem:[#allocation4 + $0x68] sm:$0xff]
    %v145 = vld [vmem:[#allocation4 + $0x70] sm:$0xff]
    %v146 = vld [vmem:[#allocation4 + $0x78] sm:$0xff]
    %v147 = vld [vmem:[#allocation4 + $0x80] sm:$0xff]
    %v148 = vld [vmem:[#allocation4 + $0x88] sm:$0xff]
    %v149 = vld [vmem:[#allocation4 + $0x90] sm:$0xff]
    %v150 = vld [vmem:[#allocation4 + $0x98] sm:$0xff]
    %v151 = vld [vmem:[#allocation4 + $0xa0] sm:$0xff]
    %v152 = vld [vmem:[#allocation4 + $0xa8] sm:$0xff]
    %v153 = vld [vmem:[#allocation4 + $0xb0] sm:$0xff]
    %v154 = vld [vmem:[#allocation4 + $0xb8] sm:$0xff]
    %v155 = vld [vmem:[#allocation4 + $0xc0] sm:$0xff]
    %v156 = vld [vmem:[#allocation4 + $0xc8] sm:$0xff]
    %v157 = vld [vmem:[#allocation4 + $0xd0] sm:$0xff]
    %v158 = vld [vmem:[#allocation4 + $0xd8] sm:$0xff]
    %v159 = vld [vmem:[#allocation4 + $0xe0] sm:$0xff]
    %v160 = vld [vmem:[#allocation4 + $0xe8] sm:$0xff]
    %v161 = vld [vmem:[#allocation4 + $0xf0] sm:$0xff]
    %v162 = vld [vmem:[#allocation4 + $0xf8] sm:$0xff]
    %v163 = vld [vmem:[#allocation4 + $0x100] sm:$0xff]
    %v164 = vld [vmem:[#allocation4 + $0x108] sm:$0xff]
    %v165 = vld [vmem:[#allocation4 + $0x110] sm:$0xff]
    %v166 = vld [vmem:[#allocation4 + $0x118] sm:$0xff]
    %v167 = vld [vmem:[#allocation4 + $0x120] sm:$0xff]
    %v168 = vld [vmem:[#allocation4 + $0x128] sm:$0xff]
    %v169 = vld [vmem:[#allocation4 + $0x130] sm:$0xff]
    %v170 = vld [vmem:[#allocation4 + $0x138] sm:$0xff]
    %v171 = vld [vmem:[#allocation4 + $0x140] sm:$0xff]
    %v172 = vld [vmem:[#allocation4 + $0x148] sm:$0xff]
    %v173 = vld [vmem:[#allocation4 + $0x150] sm:$0xff]
    %v174 = vld [vmem:[#allocation4 + $0x158] sm:$0xff]
    %v175 = vld [vmem:[#allocation4 + $0x160] sm:$0xff]
    %v176 = vld [vmem:[#allocation4 + $0x168] sm:$0xff]
    %v177 = vld [vmem:[#allocation4 + $0x170] sm:$0xff]
    %v178 = vld [vmem:[#allocation4 + $0x178] sm:$0xff]
    %179 = vmatpush.msra.mxu0 %v176
    %180 = vmatpush.msra.mxu0 %v173
    %181 = vmatpush.msra.mxu0 %v170
    %182 = vmatpush.msra.mxu0 %v167
    %183 = vmatpush.msra.mxu0 %v164
    %184 = vmatpush.msra.mxu0 %v161
    %185 = vmatpush.msra.mxu0 %v158
    %186 = vmatpush.msra.mxu0 %v155
    %187 = vmatpush.msra.mxu0 %v152
    %188 = vmatpush.msra.mxu0 %v149
    %189 = vmatpush.msra.mxu0 %v146
    %190 = vmatpush.msra.mxu0 %v143
    %191 = vmatpush.msra.mxu0 %v140
    %192 = vmatpush.msra.mxu0 %v137
    %193 = vmatpush.msra.mxu0 %v134
    %194 = vmatpush.msra.mxu0 %v131
    %195 = vmatmul.f32.gmra.mxu0 %v123
    %v196 = vpop.f32.mrf.mxu0
    %v197 = vadd.f32 0.0, %v196
    %198 = vmatmul.f32.gmra.mxu0 %v124
    %v199 = vpop.f32.mrf.mxu0
    %v200 = vadd.f32 0.0, %v199
    %201 = vmatmul.f32.gmra.mxu0 %v125
    %v202 = vpop.f32.mrf.mxu0
    %v203 = vadd.f32 0.0, %v202
    %204 = vmatmul.f32.gmra.mxu0 %v126
    %v205 = vpop.f32.mrf.mxu0
    %v206 = vadd.f32 0.0, %v205
    %207 = vmatmul.f32.gmra.mxu0 %v127
    %v208 = vpop.f32.mrf.mxu0
    %v209 = vadd.f32 0.0, %v208
    %210 = vmatmul.f32.gmra.mxu0 %v128
    %v211 = vpop.f32.mrf.mxu0
    %v212 = vadd.f32 0.0, %v211
    %213 = vmatmul.f32.gmra.mxu0 %v129
    %v214 = vpop.f32.mrf.mxu0
    %v215 = vadd.f32 0.0, %v214
    %216 = vmatmul.f32.gmra.mxu0 %v130
    %v217 = vpop.f32.mrf.mxu0
    %v218 = vadd.f32 0.0, %v217
    %219 = vdwg.mxu0
    %220 = vmatpush.msra.mxu0 %v177
    %221 = vmatpush.msra.mxu0 %v174
    %222 = vmatpush.msra.mxu0 %v171
    %223 = vmatpush.msra.mxu0 %v168
    %224 = vmatpush.msra.mxu0 %v165
    %225 = vmatpush.msra.mxu0 %v162
    %226 = vmatpush.msra.mxu0 %v159
    %227 = vmatpush.msra.mxu0 %v156
    %228 = vmatpush.msra.mxu0 %v153
    %229 = vmatpush.msra.mxu0 %v150
    %230 = vmatpush.msra.mxu0 %v147
    %231 = vmatpush.msra.mxu0 %v144
    %232 = vmatpush.msra.mxu0 %v141
    %233 = vmatpush.msra.mxu0 %v138
    %234 = vmatpush.msra.mxu0 %v135
    %235 = vmatpush.msra.mxu0 %v132
    %236 = vmatmul.f32.gmra.mxu0 %v123
    %v237 = vpop.f32.mrf.mxu0
    %v238 = vadd.f32 0.0, %v237
    %239 = vmatmul.f32.gmra.mxu0 %v124
    %v240 = vpop.f32.mrf.mxu0
    %v241 = vadd.f32 0.0, %v240
    %242 = vmatmul.f32.gmra.mxu0 %v125
    %v243 = vpop.f32.mrf.mxu0
    %v244 = vadd.f32 0.0, %v243
    %245 = vmatmul.f32.gmra.mxu0 %v126
    %v246 = vpop.f32.mrf.mxu0
    %v247 = vadd.f32 0.0, %v246
    %248 = vmatmul.f32.gmra.mxu0 %v127
    %v249 = vpop.f32.mrf.mxu0
    %v250 = vadd.f32 0.0, %v249
    %251 = vmatmul.f32.gmra.mxu0 %v128
    %v252 = vpop.f32.mrf.mxu0
    %v253 = vadd.f32 0.0, %v252
    %254 = vmatmul.f32.gmra.mxu0 %v129
    %v255 = vpop.f32.mrf.mxu0
    %v256 = vadd.f32 0.0, %v255
    %257 = vmatmul.f32.gmra.mxu0 %v130
    %v258 = vpop.f32.mrf.mxu0
    %v259 = vadd.f32 0.0, %v258
    %260 = vdwg.mxu0
    %261 = vmatpush.msra.mxu0 %v178
    %262 = vmatpush.msra.mxu0 %v175
    %263 = vmatpush.msra.mxu0 %v172
    %264 = vmatpush.msra.mxu0 %v169
    %265 = vmatpush.msra.mxu0 %v166
    %266 = vmatpush.msra.mxu0 %v163
    %267 = vmatpush.msra.mxu0 %v160
    %268 = vmatpush.msra.mxu0 %v157
    %269 = vmatpush.msra.mxu0 %v154
    %270 = vmatpush.msra.mxu0 %v151
    %271 = vmatpush.msra.mxu0 %v148
    %272 = vmatpush.msra.mxu0 %v145
    %273 = vmatpush.msra.mxu0 %v142
    %274 = vmatpush.msra.mxu0 %v139
    %275 = vmatpush.msra.mxu0 %v136
    %276 = vmatpush.msra.mxu0 %v133
    %277 = vmatmul.f32.gmra.mxu0 %v123
    %v278 = vpop.f32.mrf.mxu0
    %v279 = vadd.f32 0.0, %v278
    %280 = vmatmul.f32.gmra.mxu0 %v124
    %v281 = vpop.f32.mrf.mxu0
    %v282 = vadd.f32 0.0, %v281
    %283 = vmatmul.f32.gmra.mxu0 %v125
    %v284 = vpop.f32.mrf.mxu0
    %v285 = vadd.f32 0.0, %v284
    %286 = vmatmul.f32.gmra.mxu0 %v126
    %v287 = vpop.f32.mrf.mxu0
    %v288 = vadd.f32 0.0, %v287
    %289 = vmatmul.f32.gmra.mxu0 %v127
    %v290 = vpop.f32.mrf.mxu0
    %v291 = vadd.f32 0.0, %v290
    %292 = vmatmul.f32.gmra.mxu0 %v128
    %v293 = vpop.f32.mrf.mxu0
    %v294 = vadd.f32 0.0, %v293
    %295 = vmatmul.f32.gmra.mxu0 %v129
    %v296 = vpop.f32.mrf.mxu0
    %v297 = vadd.f32 0.0, %v296
    %298 = vmatmul.f32.gmra.mxu0 %v130
    %v299 = vpop.f32.mrf.mxu0
    %v300 = vadd.f32 0.0, %v299
    %301 = vdwg.mxu0
    %v302 = vld [vmem:[#allocation6] sm:$0xff]
    %v303 = vld [vmem:[#allocation6 + $0x8] sm:$0xff]
    %v304 = vld [vmem:[#allocation6 + $0x10] sm:$0xff]
    %v305 = vld [vmem:[#allocation6 + $0x18] sm:$0xff]
    %v306 = vld [vmem:[#allocation6 + $0x20] sm:$0xff]
    %v307 = vld [vmem:[#allocation6 + $0x28] sm:$0xff]
    %v308 = vld [vmem:[#allocation6 + $0x30] sm:$0xff]
    %v309 = vld [vmem:[#allocation6 + $0x38] sm:$0xff]
    %v310 = vld [vmem:[#allocation6 + $0x40] sm:$0xff]
    %v311 = vld [vmem:[#allocation6 + $0x48] sm:$0xff]
    %v312 = vld [vmem:[#allocation6 + $0x50] sm:$0xff]
    %v313 = vld [vmem:[#allocation6 + $0x58] sm:$0xff]
    %v314 = vld [vmem:[#allocation6 + $0x60] sm:$0xff]
    %v315 = vld [vmem:[#allocation6 + $0x68] sm:$0xff]
    %v316 = vld [vmem:[#allocation6 + $0x70] sm:$0xff]
    %v317 = vld [vmem:[#allocation6 + $0x78] sm:$0xff]
    %v318 = vld [vmem:[#allocation6 + $0x80] sm:$0xff]
    %v319 = vld [vmem:[#allocation6 + $0x88] sm:$0xff]
    %v320 = vld [vmem:[#allocation6 + $0x90] sm:$0xff]
    %v321 = vld [vmem:[#allocation6 + $0x98] sm:$0xff]
    %v322 = vld [vmem:[#allocation6 + $0xa0] sm:$0xff]
    %v323 = vld [vmem:[#allocation6 + $0xa8] sm:$0xff]
    %v324 = vld [vmem:[#allocation6 + $0xb0] sm:$0xff]
    %v325 = vld [vmem:[#allocation6 + $0xb8] sm:$0xff]
    %v326 = vld [vmem:[#allocation6 + $0xc0] sm:$0xff]
    %v327 = vld [vmem:[#allocation6 + $0xc8] sm:$0xff]
    %v328 = vld [vmem:[#allocation6 + $0xd0] sm:$0xff]
    %v329 = vld [vmem:[#allocation6 + $0xd8] sm:$0xff]
    %v330 = vld [vmem:[#allocation6 + $0xe0] sm:$0xff]
    %v331 = vld [vmem:[#allocation6 + $0xe8] sm:$0xff]
    %v332 = vld [vmem:[#allocation6 + $0xf0] sm:$0xff]
    %v333 = vld [vmem:[#allocation6 + $0xf8] sm:$0xff]
    %v334 = vld [vmem:[#allocation6 + $0x100] sm:$0xff]
    %v335 = vld [vmem:[#allocation6 + $0x108] sm:$0xff]
    %v336 = vld [vmem:[#allocation6 + $0x110] sm:$0xff]
    %v337 = vld [vmem:[#allocation6 + $0x118] sm:$0xff]
    %v338 = vld [vmem:[#allocation6 + $0x120] sm:$0xff]
    %v339 = vld [vmem:[#allocation6 + $0x128] sm:$0xff]
    %v340 = vld [vmem:[#allocation6 + $0x130] sm:$0xff]
    %v341 = vld [vmem:[#allocation6 + $0x138] sm:$0xff]
    %v342 = vld [vmem:[#allocation6 + $0x140] sm:$0xff]
    %v343 = vld [vmem:[#allocation6 + $0x148] sm:$0xff]
    %v344 = vld [vmem:[#allocation6 + $0x150] sm:$0xff]
    %v345 = vld [vmem:[#allocation6 + $0x158] sm:$0xff]
    %v346 = vld [vmem:[#allocation6 + $0x160] sm:$0xff]
    %v347 = vld [vmem:[#allocation6 + $0x168] sm:$0xff]
    %v348 = vld [vmem:[#allocation6 + $0x170] sm:$0xff]
    %v349 = vld [vmem:[#allocation6 + $0x178] sm:$0xff]
    %v350 = vld [vmem:[%s3] sm:$0x1]
    %v352 = vperm.slane %v350, 0
    %354 = vmatpush.msra.mxu0 %v317
    %355 = vmatpush.msra.mxu0 %v316
    %356 = vmatpush.msra.mxu0 %v315
    %357 = vmatpush.msra.mxu0 %v314
    %358 = vmatpush.msra.mxu0 %v313
    %359 = vmatpush.msra.mxu0 %v312
    %360 = vmatpush.msra.mxu0 %v311
    %361 = vmatpush.msra.mxu0 %v310
    %362 = vmatpush.msra.mxu0 %v309
    %363 = vmatpush.msra.mxu0 %v308
    %364 = vmatpush.msra.mxu0 %v307
    %365 = vmatpush.msra.mxu0 %v306
    %366 = vmatpush.msra.mxu0 %v305
    %367 = vmatpush.msra.mxu0 %v304
    %368 = vmatpush.msra.mxu0 %v303
    %369 = vmatpush.msra.mxu0 %v302
    %370 = vmatmul.f32.gmra.mxu0 %v197
    %v371 = vpop.f32.mrf.mxu0
    %v372 = vadd.f32 %v352, %v371
    %373 = vmatmul.f32.gmra.mxu0 %v200
    %v374 = vpop.f32.mrf.mxu0
    %v375 = vadd.f32 %v352, %v374
    %376 = vmatmul.f32.gmra.mxu0 %v203
    %v377 = vpop.f32.mrf.mxu0
    %v378 = vadd.f32 %v352, %v377
    %379 = vmatmul.f32.gmra.mxu0 %v206
    %v380 = vpop.f32.mrf.mxu0
    %v381 = vadd.f32 %v352, %v380
    %382 = vmatmul.f32.gmra.mxu0 %v209
    %v383 = vpop.f32.mrf.mxu0
    %v384 = vadd.f32 %v352, %v383
    %385 = vmatmul.f32.gmra.mxu0 %v212
    %v386 = vpop.f32.mrf.mxu0
    %v387 = vadd.f32 %v352, %v386
    %388 = vmatmul.f32.gmra.mxu0 %v215
    %v389 = vpop.f32.mrf.mxu0
    %v390 = vadd.f32 %v352, %v389
    %391 = vmatmul.f32.gmra.mxu0 %v218
    %v392 = vpop.f32.mrf.mxu0
    %v393 = vadd.f32 %v352, %v392
    %394 = vdwg.mxu0
    %395 = vmatpush.msra.mxu0 %v333
    %396 = vmatpush.msra.mxu0 %v332
    %397 = vmatpush.msra.mxu0 %v331
    %398 = vmatpush.msra.mxu0 %v330
    %399 = vmatpush.msra.mxu0 %v329
    %400 = vmatpush.msra.mxu0 %v328
    %401 = vmatpush.msra.mxu0 %v327
    %402 = vmatpush.msra.mxu0 %v326
    %403 = vmatpush.msra.mxu0 %v325
    %404 = vmatpush.msra.mxu0 %v324
    %405 = vmatpush.msra.mxu0 %v323
    %406 = vmatpush.msra.mxu0 %v322
    %407 = vmatpush.msra.mxu0 %v321
    %408 = vmatpush.msra.mxu0 %v320
    %409 = vmatpush.msra.mxu0 %v319
    %410 = vmatpush.msra.mxu0 %v318
    %411 = vmatmul.f32.gmra.mxu0 %v238
    %v412 = vpop.f32.mrf.mxu0
    %v413 = vadd.f32 %v372, %v412
    %414 = vmatmul.f32.gmra.mxu0 %v241
    %v415 = vpop.f32.mrf.mxu0
    %v416 = vadd.f32 %v375, %v415
    %417 = vmatmul.f32.gmra.mxu0 %v244
    %v418 = vpop.f32.mrf.mxu0
    %v419 = vadd.f32 %v378, %v418
    %420 = vmatmul.f32.gmra.mxu0 %v247
    %v421 = vpop.f32.mrf.mxu0
    %v422 = vadd.f32 %v381, %v421
    %423 = vmatmul.f32.gmra.mxu0 %v250
    %v424 = vpop.f32.mrf.mxu0
    %v425 = vadd.f32 %v384, %v424
    %426 = vmatmul.f32.gmra.mxu0 %v253
    %v427 = vpop.f32.mrf.mxu0
    %v428 = vadd.f32 %v387, %v427
    %429 = vmatmul.f32.gmra.mxu0 %v256
    %v430 = vpop.f32.mrf.mxu0
    %v431 = vadd.f32 %v390, %v430
    %432 = vmatmul.f32.gmra.mxu0 %v259
    %v433 = vpop.f32.mrf.mxu0
    %v434 = vadd.f32 %v393, %v433
    %435 = vdwg.mxu0
    %436 = vmatpush.msra.mxu0 %v349
    %437 = vmatpush.msra.mxu0 %v348
    %438 = vmatpush.msra.mxu0 %v347
    %439 = vmatpush.msra.mxu0 %v346
    %440 = vmatpush.msra.mxu0 %v345
    %441 = vmatpush.msra.mxu0 %v344
    %442 = vmatpush.msra.mxu0 %v343
    %443 = vmatpush.msra.mxu0 %v342
    %444 = vmatpush.msra.mxu0 %v341
    %445 = vmatpush.msra.mxu0 %v340
    %446 = vmatpush.msra.mxu0 %v339
    %447 = vmatpush.msra.mxu0 %v338
    %448 = vmatpush.msra.mxu0 %v337
    %449 = vmatpush.msra.mxu0 %v336
    %450 = vmatpush.msra.mxu0 %v335
    %451 = vmatpush.msra.mxu0 %v334
    %452 = vmatmul.f32.gmra.mxu0 %v279
    %v453 = vpop.f32.mrf.mxu0
    %v454 = vadd.f32 %v413, %v453
    %455 = vmatmul.f32.gmra.mxu0 %v282
    %v456 = vpop.f32.mrf.mxu0
    %v457 = vadd.f32 %v416, %v456
    %458 = vmatmul.f32.gmra.mxu0 %v285
    %v459 = vpop.f32.mrf.mxu0
    %v460 = vadd.f32 %v419, %v459
    %461 = vmatmul.f32.gmra.mxu0 %v288
    %v462 = vpop.f32.mrf.mxu0
    %v463 = vadd.f32 %v422, %v462
    %464 = vmatmul.f32.gmra.mxu0 %v291
    %v465 = vpop.f32.mrf.mxu0
    %v466 = vadd.f32 %v425, %v465
    %467 = vmatmul.f32.gmra.mxu0 %v294
    %v468 = vpop.f32.mrf.mxu0
    %v469 = vadd.f32 %v428, %v468
    %470 = vmatmul.f32.gmra.mxu0 %v297
    %v471 = vpop.f32.mrf.mxu0
    %v472 = vadd.f32 %v431, %v471
    %473 = vmatmul.f32.gmra.mxu0 %v300
    %v474 = vpop.f32.mrf.mxu0
    %v475 = vadd.f32 %v434, %v474
    %476 = vdwg.mxu0
    %477 = vst [vmem:[#allocation2] sm:$0xff] %v454
    %478 = vst [vmem:[#allocation2 + $0x8] sm:$0xff] %v457
    %479 = vst [vmem:[#allocation2 + $0x10] sm:$0xff] %v460
    %480 = vst [vmem:[#allocation2 + $0x18] sm:$0xff] %v463
    %481 = vst [vmem:[#allocation2 + $0x20] sm:$0xff] %v466
    %482 = vst [vmem:[#allocation2 + $0x28] sm:$0xff] %v469
    %483 = vst [vmem:[#allocation2 + $0x30] sm:$0xff] %v472
    %484 = vst [vmem:[#allocation2 + $0x38] sm:$0xff] %v475
    %vm485 = vcmp.ge.s32.totalorder %v90, 64
    %vm486 = vcmp.lt.s32.totalorder %v90, 96
    %vm487 = vmand %vm485, %vm486
    %vm488 = vcmp.lt.s32.totalorder %v90, 32
    %v489 = vld [vmem:[#allocation2] sm:$0xff]
    %v490 = vld [vmem:[%s4] sm:$0xff]
    %v491 = vld [vmem:[%s4 + $0x8] sm:$0xff]
    %v492 = vld [vmem:[%s4 + $0x10] sm:$0xff]
    %v493 = vld [vmem:[%s4 + $0x18] sm:$0xff]
    %v494 = vld [vmem:[%s4 + $0x20] sm:$0xff]
    %v495 = vld [vmem:[%s4 + $0x28] sm:$0xff]
    %v496 = vld [vmem:[%s4 + $0x30] sm:$0xff]
    %v497 = vld [vmem:[%s4 + $0x38] sm:$0xff]
    %v498 = vld [vmem:[%s4 + $0x40] sm:$0xff]
    %v499 = vld [vmem:[%s4 + $0x48] sm:$0xff]
    %v500 = vld [vmem:[%s4 + $0x50] sm:$0xff]
    %v501 = vld [vmem:[%s4 + $0x58] sm:$0xff]
    %v502 = vld [vmem:[%s4 + $0x60] sm:$0xff]
    %v503 = vld [vmem:[%s4 + $0x68] sm:$0xff]
    %v504 = vld [vmem:[%s4 + $0x70] sm:$0xff]
    %v505 = vld [vmem:[%s4 + $0x78] sm:$0xff]
    %506 = vmatpush.msra.mxu0 %v505
    %507 = vmatpush.msra.mxu0 %v504
    %508 = vmatpush.msra.mxu0 %v503
    %509 = vmatpush.msra.mxu0 %v502
    %510 = vmatpush.msra.mxu0 %v501
    %511 = vmatpush.msra.mxu0 %v500
    %512 = vmatpush.msra.mxu0 %v499
    %513 = vmatpush.msra.mxu0 %v498
    %514 = vmatpush.msra.mxu0 %v497
    %515 = vmatpush.msra.mxu0 %v496
    %516 = vmatpush.msra.mxu0 %v495
    %517 = vmatpush.msra.mxu0 %v494
    %518 = vmatpush.msra.mxu0 %v493
    %519 = vmatpush.msra.mxu0 %v492
    %520 = vmatpush.msra.mxu0 %v491
    %521 = vmatpush.msra.mxu0 %v490
    %522 = vmatmul.f32.gmra.mxu0 0.0
    %v523 = vpop.f32.mrf.mxu0
    %v524 = vadd.f32 0.0, %v523
    %525 = vdwg.mxu0
    %v526 = vadd.f32 %v489, %v524
    %v527 = vtanh.pop %v526
    %v528 = vmul.f32 %v526, 0.5
    %v529 = vtanh.pop %v528
    %v530 = vadd.f32 %v529, 1.0
    %v531 = vmul.f32 %v530, 0.5
    %v532 = vsel %vm487, %v527, %v531
    %533 = vrot.lane.b32.xlu0 %v532, 96
    %v534 = vpop.permute.xlu0 %533
    %535 = vrot.lane.b32.xlu0 %v532, 64
    %v536 = vpop.permute.xlu0 %535
    %537 = vrot.lane.b32.xlu0 %v532, 32
    %v538 = vpop.permute.xlu0 %537
    %v539 = vmul.f32 %v534, 0.0
    %v540 = vmul.f32 %v532, %v536
    %v541 = vadd.f32 %v539, %v540
    %v542 = vsel %vm488, %v541, 0.0
    %v543 = vtanh.pop %v542
    %v544 = vmul.f32 %v538, %v543
    %s545 = scalar_lea.vmem [#allocation2], 8
    %v546 = vld [vmem:[%s545] sm:$0xff]
    %547 = vmatpush.msra.mxu0 %v505
    %548 = vmatpush.msra.mxu0 %v504
    %549 = vmatpush.msra.mxu0 %v503
    %550 = vmatpush.msra.mxu0 %v502
    %551 = vmatpush.msra.mxu0 %v501
    %552 = vmatpush.msra.mxu0 %v500
    %553 = vmatpush.msra.mxu0 %v499
    %554 = vmatpush.msra.mxu0 %v498
    %555 = vmatpush.msra.mxu0 %v497
    %556 = vmatpush.msra.mxu0 %v496
    %557 = vmatpush.msra.mxu0 %v495
    %558 = vmatpush.msra.mxu0 %v494
    %559 = vmatpush.msra.mxu0 %v493
    %560 = vmatpush.msra.mxu0 %v492
    %561 = vmatpush.msra.mxu0 %v491
    %562 = vmatpush.msra.mxu0 %v490
    %563 = vmatmul.f32.gmra.mxu0 %v544
    %v564 = vpop.f32.mrf.mxu0
    %v565 = vadd.f32 0.0, %v564
    %566 = vdwg.mxu0
    %v567 = vadd.f32 %v546, %v565
    %v568 = vtanh.pop %v567
    %v569 = vmul.f32 %v567, 0.5
    %v570 = vtanh.pop %v569
    %v571 = vadd.f32 %v570, 1.0
    %v572 = vmul.f32 %v571, 0.5
    %v573 = vsel %vm487, %v568, %v572
    %574 = vrot.lane.b32.xlu0 %v573, 96
    %v575 = vpop.permute.xlu0 %574
    %576 = vrot.lane.b32.xlu0 %v573, 64
    %v577 = vpop.permute.xlu0 %576
    %578 = vrot.lane.b32.xlu0 %v573, 32
    %v579 = vpop.permute.xlu0 %578
    %v580 = vmul.f32 %v575, %v542
    %v581 = vmul.f32 %v573, %v577
    %v582 = vadd.f32 %v580, %v581
    %v583 = vsel %vm488, %v582, 0.0
    %v584 = vtanh.pop %v583
    %v585 = vmul.f32 %v579, %v584
    %s586 = scalar_lea.vmem [#allocation2], 16
    %v587 = vld [vmem:[%s586] sm:$0xff]
    %588 = vmatpush.msra.mxu0 %v505
    %589 = vmatpush.msra.mxu0 %v504
    %590 = vmatpush.msra.mxu0 %v503
    %591 = vmatpush.msra.mxu0 %v502
    %592 = vmatpush.msra.mxu0 %v501
    %593 = vmatpush.msra.mxu0 %v500
    %594 = vmatpush.msra.mxu0 %v499
    %595 = vmatpush.msra.mxu0 %v498
    %596 = vmatpush.msra.mxu0 %v497
    %597 = vmatpush.msra.mxu0 %v496
    %598 = vmatpush.msra.mxu0 %v495
    %599 = vmatpush.msra.mxu0 %v494
    %600 = vmatpush.msra.mxu0 %v493
    %601 = vmatpush.msra.mxu0 %v492
    %602 = vmatpush.msra.mxu0 %v491
    %603 = vmatpush.msra.mxu0 %v490
    %604 = vmatmul.f32.gmra.mxu0 %v585
    %v605 = vpop.f32.mrf.mxu0
    %v606 = vadd.f32 0.0, %v605
    %607 = vdwg.mxu0
    %v608 = vadd.f32 %v587, %v606
    %v609 = vtanh.pop %v608
    %v610 = vmul.f32 %v608, 0.5
    %v611 = vtanh.pop %v610
    %v612 = vadd.f32 %v611, 1.0
    %v613 = vmul.f32 %v612, 0.5
    %v614 = vsel %vm487, %v609, %v613
    %615 = vrot.lane.b32.xlu0 %v614, 96
    %v616 = vpop.permute.xlu0 %615
    %617 = vrot.lane.b32.xlu0 %v614, 64
    %v618 = vpop.permute.xlu0 %617
    %619 = vrot.lane.b32.xlu0 %v614, 32
    %v620 = vpop.permute.xlu0 %619
    %v621 = vmul.f32 %v616, %v583
    %v622 = vmul.f32 %v614, %v618
    %v623 = vadd.f32 %v621, %v622
    %v624 = vsel %vm488, %v623, 0.0
    %v625 = vtanh.pop %v624
    %v626 = vmul.f32 %v620, %v625
    %s627 = scalar_lea.vmem [#allocation2], 24
    %v628 = vld [vmem:[%s627] sm:$0xff]
    %629 = vmatpush.msra.mxu0 %v505
    %630 = vmatpush.msra.mxu0 %v504
    %631 = vmatpush.msra.mxu0 %v503
    %632 = vmatpush.msra.mxu0 %v502
    %633 = vmatpush.msra.mxu0 %v501
    %634 = vmatpush.msra.mxu0 %v500
    %635 = vmatpush.msra.mxu0 %v499
    %636 = vmatpush.msra.mxu0 %v498
    %637 = vmatpush.msra.mxu0 %v497
    %638 = vmatpush.msra.mxu0 %v496
    %639 = vmatpush.msra.mxu0 %v495
    %640 = vmatpush.msra.mxu0 %v494
    %641 = vmatpush.msra.mxu0 %v493
    %642 = vmatpush.msra.mxu0 %v492
    %643 = vmatpush.msra.mxu0 %v491
    %644 = vmatpush.msra.mxu0 %v490
    %645 = vmatmul.f32.gmra.mxu0 %v626
    %v646 = vpop.f32.mrf.mxu0
    %v647 = vadd.f32 0.0, %v646
    %648 = vdwg.mxu0
    %v649 = vadd.f32 %v628, %v647
    %v650 = vtanh.pop %v649
    %v651 = vmul.f32 %v649, 0.5
    %v652 = vtanh.pop %v651
    %v653 = vadd.f32 %v652, 1.0
    %v654 = vmul.f32 %v653, 0.5
    %v655 = vsel %vm487, %v650, %v654
    %656 = vrot.lane.b32.xlu0 %v655, 96
    %v657 = vpop.permute.xlu0 %656
    %658 = vrot.lane.b32.xlu0 %v655, 64
    %v659 = vpop.permute.xlu0 %658
    %660 = vrot.lane.b32.xlu0 %v655, 32
    %v661 = vpop.permute.xlu0 %660
    %v662 = vmul.f32 %v657, %v624
    %v663 = vmul.f32 %v655, %v659
    %v664 = vadd.f32 %v662, %v663
    %v665 = vsel %vm488, %v664, 0.0
    %v666 = vtanh.pop %v665
    %v667 = vmul.f32 %v661, %v666
    %s668 = scalar_lea.vmem [#allocation2], 32
    %v669 = vld [vmem:[%s668] sm:$0xff]
    %670 = vmatpush.msra.mxu0 %v505
    %671 = vmatpush.msra.mxu0 %v504
    %672 = vmatpush.msra.mxu0 %v503
    %673 = vmatpush.msra.mxu0 %v502
    %674 = vmatpush.msra.mxu0 %v501
    %675 = vmatpush.msra.mxu0 %v500
    %676 = vmatpush.msra.mxu0 %v499
    %677 = vmatpush.msra.mxu0 %v498
    %678 = vmatpush.msra.mxu0 %v497
    %679 = vmatpush.msra.mxu0 %v496
    %680 = vmatpush.msra.mxu0 %v495
    %681 = vmatpush.msra.mxu0 %v494
    %682 = vmatpush.msra.mxu0 %v493
    %683 = vmatpush.msra.mxu0 %v492
    %684 = vmatpush.msra.mxu0 %v491
    %685 = vmatpush.msra.mxu0 %v490
    %686 = vmatmul.f32.gmra.mxu0 %v667
    %v687 = vpop.f32.mrf.mxu0
    %v688 = vadd.f32 0.0, %v687
    %689 = vdwg.mxu0
    %v690 = vadd.f32 %v669, %v688
    %v691 = vtanh.pop %v690
    %v692 = vmul.f32 %v690, 0.5
    %v693 = vtanh.pop %v692
    %v694 = vadd.f32 %v693, 1.0
    %v695 = vmul.f32 %v694, 0.5
    %v696 = vsel %vm487, %v691, %v695
    %697 = vrot.lane.b32.xlu0 %v696, 96
    %v698 = vpop.permute.xlu0 %697
    %699 = vrot.lane.b32.xlu0 %v696, 64
    %v700 = vpop.permute.xlu0 %699
    %701 = vrot.lane.b32.xlu0 %v696, 32
    %v702 = vpop.permute.xlu0 %701
    %v703 = vmul.f32 %v698, %v665
    %v704 = vmul.f32 %v696, %v700
    %v705 = vadd.f32 %v703, %v704
    %v706 = vsel %vm488, %v705, 0.0
    %v707 = vtanh.pop %v706
    %v708 = vmul.f32 %v702, %v707
    %s709 = scalar_lea.vmem [#allocation2], 40
    %v710 = vld [vmem:[%s709] sm:$0xff]
    %711 = vmatpush.msra.mxu0 %v505
    %712 = vmatpush.msra.mxu0 %v504
    %713 = vmatpush.msra.mxu0 %v503
    %714 = vmatpush.msra.mxu0 %v502
    %715 = vmatpush.msra.mxu0 %v501
    %716 = vmatpush.msra.mxu0 %v500
    %717 = vmatpush.msra.mxu0 %v499
    %718 = vmatpush.msra.mxu0 %v498
    %719 = vmatpush.msra.mxu0 %v497
    %720 = vmatpush.msra.mxu0 %v496
    %721 = vmatpush.msra.mxu0 %v495
    %722 = vmatpush.msra.mxu0 %v494
    %723 = vmatpush.msra.mxu0 %v493
    %724 = vmatpush.msra.mxu0 %v492
    %725 = vmatpush.msra.mxu0 %v491
    %726 = vmatpush.msra.mxu0 %v490
    %727 = vmatmul.f32.gmra.mxu0 %v708
    %v728 = vpop.f32.mrf.mxu0
    %v729 = vadd.f32 0.0, %v728
    %730 = vdwg.mxu0
    %v731 = vadd.f32 %v710, %v729
    %v732 = vtanh.pop %v731
    %v733 = vmul.f32 %v731, 0.5
    %v734 = vtanh.pop %v733
    %v735 = vadd.f32 %v734, 1.0
    %v736 = vmul.f32 %v735, 0.5
    %v737 = vsel %vm487, %v732, %v736
    %738 = vrot.lane.b32.xlu0 %v737, 96
    %v739 = vpop.permute.xlu0 %738
    %740 = vrot.lane.b32.xlu0 %v737, 64
    %v741 = vpop.permute.xlu0 %740
    %742 = vrot.lane.b32.xlu0 %v737, 32
    %v743 = vpop.permute.xlu0 %742
    %v744 = vmul.f32 %v739, %v706
    %v745 = vmul.f32 %v737, %v741
    %v746 = vadd.f32 %v744, %v745
    %v747 = vsel %vm488, %v746, 0.0
    %v748 = vtanh.pop %v747
    %v749 = vmul.f32 %v743, %v748
    %s750 = scalar_lea.vmem [#allocation2], 48
    %v751 = vld [vmem:[%s750] sm:$0xff]
    %752 = vmatpush.msra.mxu0 %v505
    %753 = vmatpush.msra.mxu0 %v504
    %754 = vmatpush.msra.mxu0 %v503
    %755 = vmatpush.msra.mxu0 %v502
    %756 = vmatpush.msra.mxu0 %v501
    %757 = vmatpush.msra.mxu0 %v500
    %758 = vmatpush.msra.mxu0 %v499
    %759 = vmatpush.msra.mxu0 %v498
    %760 = vmatpush.msra.mxu0 %v497
    %761 = vmatpush.msra.mxu0 %v496
    %762 = vmatpush.msra.mxu0 %v495
    %763 = vmatpush.msra.mxu0 %v494
    %764 = vmatpush.msra.mxu0 %v493
    %765 = vmatpush.msra.mxu0 %v492
    %766 = vmatpush.msra.mxu0 %v491
    %767 = vmatpush.msra.mxu0 %v490
    %768 = vmatmul.f32.gmra.mxu0 %v749
    %v769 = vpop.f32.mrf.mxu0
    %v770 = vadd.f32 0.0, %v769
    %771 = vdwg.mxu0
    %v772 = vadd.f32 %v751, %v770
    %v773 = vtanh.pop %v772
    %v774 = vmul.f32 %v772, 0.5
    %v775 = vtanh.pop %v774
    %v776 = vadd.f32 %v775, 1.0
    %v777 = vmul.f32 %v776, 0.5
    %v778 = vsel %vm487, %v773, %v777
    %779 = vrot.lane.b32.xlu0 %v778, 96
    %v780 = vpop.permute.xlu0 %779
    %781 = vrot.lane.b32.xlu0 %v778, 64
    %v782 = vpop.permute.xlu0 %781
    %783 = vrot.lane.b32.xlu0 %v778, 32
    %v784 = vpop.permute.xlu0 %783
    %v785 = vmul.f32 %v780, %v747
    %v786 = vmul.f32 %v778, %v782
    %v787 = vadd.f32 %v785, %v786
    %v788 = vsel %vm488, %v787, 0.0
    %v789 = vtanh.pop %v788
    %v790 = vmul.f32 %v784, %v789
    %s791 = scalar_lea.vmem [#allocation2], 56
    %v792 = vld [vmem:[%s791] sm:$0xff]
    %793 = vmatpush.msra.mxu0 %v505
    %794 = vmatpush.msra.mxu0 %v504
    %795 = vmatpush.msra.mxu0 %v503
    %796 = vmatpush.msra.mxu0 %v502
    %797 = vmatpush.msra.mxu0 %v501
    %798 = vmatpush.msra.mxu0 %v500
    %799 = vmatpush.msra.mxu0 %v499
    %800 = vmatpush.msra.mxu0 %v498
    %801 = vmatpush.msra.mxu0 %v497
    %802 = vmatpush.msra.mxu0 %v496
    %803 = vmatpush.msra.mxu0 %v495
    %804 = vmatpush.msra.mxu0 %v494
    %805 = vmatpush.msra.mxu0 %v493
    %806 = vmatpush.msra.mxu0 %v492
    %807 = vmatpush.msra.mxu0 %v491
    %808 = vmatpush.msra.mxu0 %v490
    %809 = vmatmul.f32.gmra.mxu0 %v790
    %v810 = vpop.f32.mrf.mxu0
    %v811 = vadd.f32 0.0, %v810
    %812 = vdwg.mxu0
    %v813 = vadd.f32 %v792, %v811
    %v814 = vtanh.pop %v813
    %v815 = vmul.f32 %v813, 0.5
    %v816 = vtanh.pop %v815
    %v817 = vadd.f32 %v816, 1.0
    %v818 = vmul.f32 %v817, 0.5
    %v819 = vsel %vm487, %v814, %v818
    %820 = vrot.lane.b32.xlu0 %v819, 96
    %v821 = vpop.permute.xlu0 %820
    %822 = vrot.lane.b32.xlu0 %v819, 64
    %v823 = vpop.permute.xlu0 %822
    %824 = vrot.lane.b32.xlu0 %v819, 32
    %v825 = vpop.permute.xlu0 %824
    %v826 = vmul.f32 %v821, %v788
    %v827 = vmul.f32 %v819, %v823
    %v828 = vadd.f32 %v826, %v827
    %v829 = vsel %vm488, %v828, 0.0
    %v830 = vtanh.pop %v829
    %v831 = vmul.f32 %v825, %v830
    %v832 = vld [vmem:[#allocation8] sm:$0xff]
    %v833 = vld [vmem:[#allocation8 + $0x8] sm:$0xff]
    %v834 = vld [vmem:[#allocation8 + $0x10] sm:$0xff]
    %v835 = vld [vmem:[#allocation8 + $0x18] sm:$0xff]
    %v836 = vld [vmem:[#allocation8 + $0x20] sm:$0xff]
    %v837 = vld [vmem:[#allocation8 + $0x28] sm:$0xff]
    %v838 = vld [vmem:[#allocation8 + $0x30] sm:$0xff]
    %v839 = vld [vmem:[#allocation8 + $0x38] sm:$0xff]
    %v840 = vld [vmem:[#allocation8 + $0x40] sm:$0xff]
    %v841 = vld [vmem:[#allocation8 + $0x48] sm:$0xff]
    %v842 = vld [vmem:[#allocation8 + $0x50] sm:$0xff]
    %v843 = vld [vmem:[#allocation8 + $0x58] sm:$0xff]
    %v844 = vld [vmem:[#allocation8 + $0x60] sm:$0xff]
    %v845 = vld [vmem:[#allocation8 + $0x68] sm:$0xff]
    %v846 = vld [vmem:[#allocation8 + $0x70] sm:$0xff]
    %v847 = vld [vmem:[#allocation8 + $0x78] sm:$0xff]
    %v848 = vld [vmem:[%s6] sm:$0x1]
    %v850 = vperm.slane %v848, 0
    %852 = vmatpush.msra.mxu0 %v847
    %853 = vmatpush.msra.mxu0 %v846
    %854 = vmatpush.msra.mxu0 %v845
    %855 = vmatpush.msra.mxu0 %v844
    %856 = vmatpush.msra.mxu0 %v843
    %857 = vmatpush.msra.mxu0 %v842
    %858 = vmatpush.msra.mxu0 %v841
    %859 = vmatpush.msra.mxu0 %v840
    %860 = vmatpush.msra.mxu0 %v839
    %861 = vmatpush.msra.mxu0 %v838
    %862 = vmatpush.msra.mxu0 %v837
    %863 = vmatpush.msra.mxu0 %v836
    %864 = vmatpush.msra.mxu0 %v835
    %865 = vmatpush.msra.mxu0 %v834
    %866 = vmatpush.msra.mxu0 %v833
    %867 = vmatpush.msra.mxu0 %v832
    %868 = vmatmul.f32.gmra.mxu0 %v831
    %v869 = vpop.f32.mrf.mxu0
    %v870 = vadd.f32 %v850, %v869
    %871 = vdwg.mxu0
    %v872 = vtanh.pop %v870
    %v873 = vld [vmem:[%s7] sm:$0xff]
    %v874 = vld [vmem:[%s7 + $0x8] sm:$0xff]
    %v875 = vld [vmem:[%s7 + $0x10] sm:$0xff]
    %v876 = vld [vmem:[%s7 + $0x18] sm:$0xff]
    %v877 = vld [vmem:[%s7 + $0x20] sm:$0xff]
    %v878 = vld [vmem:[%s7 + $0x28] sm:$0xff]
    %v879 = vld [vmem:[%s7 + $0x30] sm:$0xff]
    %v880 = vld [vmem:[%s7 + $0x38] sm:$0xff]
    %v881 = vld [vmem:[%s7 + $0x40] sm:$0xff]
    %v882 = vld [vmem:[%s7 + $0x48] sm:$0xff]
    %v883 = vld [vmem:[%s7 + $0x50] sm:$0xff]
    %v884 = vld [vmem:[%s7 + $0x58] sm:$0xff]
    %v885 = vld [vmem:[%s7 + $0x60] sm:$0xff]
    %v886 = vld [vmem:[%s7 + $0x68] sm:$0xff]
    %v887 = vld [vmem:[%s7 + $0x70] sm:$0xff]
    %v888 = vld [vmem:[%s7 + $0x78] sm:$0xff]
    %v889 = vld [vmem:[#allocation3] sm:$0x1]
    %v891 = vperm.slane %v889, 0
    %893 = vmatpush.msra.mxu0 %v888
    %894 = vmatpush.msra.mxu0 %v887
    %895 = vmatpush.msra.mxu0 %v886
    %896 = vmatpush.msra.mxu0 %v885
    %897 = vmatpush.msra.mxu0 %v884
    %898 = vmatpush.msra.mxu0 %v883
    %899 = vmatpush.msra.mxu0 %v882
    %900 = vmatpush.msra.mxu0 %v881
    %901 = vmatpush.msra.mxu0 %v880
    %902 = vmatpush.msra.mxu0 %v879
    %903 = vmatpush.msra.mxu0 %v878
    %904 = vmatpush.msra.mxu0 %v877
    %905 = vmatpush.msra.mxu0 %v876
    %906 = vmatpush.msra.mxu0 %v875
    %907 = vmatpush.msra.mxu0 %v874
    %908 = vmatpush.msra.mxu0 %v873
    %909 = vmatmul.f32.gmra.mxu0 %v872
    %v910 = vpop.f32.mrf.mxu0
    %v911 = vadd.f32 %v891, %v910
    %912 = vdwg.mxu0
    %v913 = vmul.f32 %v911, 0.5
    %v914 = vtanh.pop %v913
    %v915 = vadd.f32 %v914, 1.0
    %v916 = vmul.f32 %v915, 0.5
    %vm917 = vcmask 7168
    %918 = vst.msk [vmem:[%s9] sm:$0xff] %vm917, %v916
    // Predicated region
    $region50: #{tpu_custom_call.1} parent=1 // pred_check
      _
    $region51: #{tpu_custom_call.1} parent=1 // pred_check_branch
      %920 = sbr.rel (0) target = $region53
    $region52: #{tpu_custom_call.1} parent=1 // pred_region
      _
    $region53: #{tpu_custom_call.1} parent=1 // pred_fallthru
      _
    // Predicated region
    $region54: #{tpu_custom_call.1} parent=1 // pred_check
      _
    $region55: #{tpu_custom_call.1} parent=1 // pred_check_branch
      %922 = sbr.rel (0) target = $region57
    $region56: #{tpu_custom_call.1} parent=1 // pred_region
      _
    $region57: #{tpu_custom_call.1} parent=1 // pred_fallthru
      _
    %923 = vsyncpa [#allocation5], 1
    %924 = vsyncpa [#allocation7], 1

</llo_original>
